<compile_context>
chip_gen: v5e
topology: v5e:2x2
jax: 0.10.0
libtpu: 0.0.40
codegen_flags: <defaults>
</compile_context>

<pallas_src>
import functools
import math

import jax
import jax.numpy as jnp
from jax import lax
from jax.experimental import pallas as pl
from jax.experimental.pallas import tpu as pltpu

EPS = 1e-5


def mlp_kernel(x_ref, w1_ref, w2_ref, gb_ref, o_ref,
               s1_ref, s2_ref, c1_ref, c2_ref, *, n_total):
    """3-phase fused MLP.  gb rows: [gamma1, beta1, gamma2, beta2]."""
    p = pl.program_id(0)          # phase: 0 = BN1 stats, 1 = BN2 stats, 2 = write
    i = pl.program_id(1)          # N-tile index
    inv_n = jnp.float32(1.0 / n_total)

    @pl.when(jnp.logical_and(p == 0, i == 0))
    def _init():
        s1_ref[...] = jnp.zeros_like(s1_ref)
        s2_ref[...] = jnp.zeros_like(s2_ref)

    @pl.when(jnp.logical_and(p == 1, i == 0))
    def _finalize_bn1():
        mean = s1_ref[0:1, :] * inv_n
        var = s1_ref[1:2, :] * inv_n - mean * mean          # biased variance
        scale = gb_ref[0:1, :] * lax.rsqrt(var + EPS)
        c1_ref[0:1, :] = scale
        c1_ref[1:2, :] = gb_ref[1:2, :] - mean * scale

    @pl.when(jnp.logical_and(p == 2, i == 0))
    def _finalize_bn2():
        mean = s2_ref[0:1, :] * inv_n
        var = s2_ref[1:2, :] * inv_n - mean * mean
        scale = gb_ref[2:3, :] * lax.rsqrt(var + EPS)
        c2_ref[0:1, :] = scale
        c2_ref[1:2, :] = gb_ref[3:4, :] - mean * scale

    # linear1 on the MXU (bf16 inputs, f32 accumulate).  Bias b1 is omitted:
    # it cancels exactly under the batch-mean subtraction of BN1.
    h = jnp.dot(x_ref[...], w1_ref[...], preferred_element_type=jnp.float32)

    @pl.when(p == 0)
    def _phase0():
        s1_ref[0:1, :] += jnp.sum(h, axis=0, keepdims=True)
        s1_ref[1:2, :] += jnp.sum(h * h, axis=0, keepdims=True)

    @pl.when(p == 1)
    def _phase1():
        a = jnp.maximum(h * c1_ref[0:1, :] + c1_ref[1:2, :], 0.0)
        y = jnp.dot(a.astype(w2_ref.dtype), w2_ref[...],
                    preferred_element_type=jnp.float32)
        s2_ref[0:1, :] += jnp.sum(y, axis=0, keepdims=True)
        s2_ref[1:2, :] += jnp.sum(y * y, axis=0, keepdims=True)

    @pl.when(p == 2)
    def _phase2():
        a = jnp.maximum(h * c1_ref[0:1, :] + c1_ref[1:2, :], 0.0)
        y = jnp.dot(a.astype(w2_ref.dtype), w2_ref[...],
                    preferred_element_type=jnp.float32)
        o_ref[...] = (y * c2_ref[0:1, :] + c2_ref[1:2, :]).astype(o_ref.dtype)


def _round_up(v, m):
    return ((v + m - 1) // m) * m


def _pick_tile_n(n, in_p, out_p):
    """Largest N-tile dividing n that keeps double-buffered tiles + resident
    weights under a ~40 MiB VMEM budget (v7x-safe)."""
    budget = 40 * 1024 * 1024
    weights = 2 * (in_p * out_p + out_p * out_p)              # bf16
    for cand in (1024, 512, 256, 128, 64, 32, 16, 8):
        if n % cand:
            continue
        need = 2 * cand * (in_p * 2 + out_p * 4) + weights    # x bf16, out f32
        if need <= budget:
            return cand
    return n


def mlp_forward(x, params, *, tile_n=None):
    """x: (N, in_feats) float32.  params: see init_params()."""
    n, in_feats = x.shape
    out_feats = params["gamma1"].shape[0]

    # Lane-dense padding of feature dims to multiples of 128 (zero padding is
    # exact: padded features normalize to 0 and are sliced off at the end).
    in_p = _round_up(in_feats, 128)
    out_p = _round_up(out_feats, 128)

    xb = x.astype(jnp.bfloat16)
    if in_p != in_feats:
        xb = jnp.pad(xb, ((0, 0), (0, in_p - in_feats)))

    w1t = params["w1t_bf16"]                                  # (in, out) bf16
    w2t = params["w2t_bf16"]                                  # (out, out) bf16
    gb = jnp.stack([params["gamma1"], params["beta1"],
                    params["gamma2"], params["beta2"]], axis=0)  # (4, out) f32
    if in_p != in_feats or out_p != out_feats:
        w1t = jnp.pad(w1t, ((0, in_p - in_feats), (0, out_p - out_feats)))
        w2t = jnp.pad(w2t, ((0, out_p - out_feats), (0, out_p - out_feats)))
        gb = jnp.pad(gb, ((0, 0), (0, out_p - out_feats)))

    if tile_n is None:
        tile_n = _pick_tile_n(n, in_p, out_p)
    assert n % tile_n == 0, "batch must be divisible by the N-tile"
    n_tiles = n // tile_n

    grid_spec = pltpu.PrefetchScalarGridSpec(
        num_scalar_prefetch=0,
        grid=(3, n_tiles),                                    # (phase, n_tile)
        in_specs=[
            pl.BlockSpec((tile_n, in_p), lambda p, i: (i, 0)),   # x tile
            pl.BlockSpec((in_p, out_p), lambda p, i: (0, 0)),    # W1^T resident
            pl.BlockSpec((out_p, out_p), lambda p, i: (0, 0)),   # W2^T resident
            pl.BlockSpec((4, out_p), lambda p, i: (0, 0)),       # gamma/beta slab
        ],
        out_specs=pl.BlockSpec((tile_n, out_p), lambda p, i: (i, 0)),
        scratch_shapes=[
            pltpu.VMEM((2, out_p), jnp.float32),   # BN1 [sum; sumsq]
            pltpu.VMEM((2, out_p), jnp.float32),   # BN2 [sum; sumsq]
            pltpu.VMEM((2, out_p), jnp.float32),   # BN1 [scale; shift]
            pltpu.VMEM((2, out_p), jnp.float32),   # BN2 [scale; shift]
        ],
    )

    out = pl.pallas_call(
        functools.partial(mlp_kernel, n_total=n),
        out_shape=jax.ShapeDtypeStruct((n, out_p), jnp.float32),
        grid_spec=grid_spec,
        compiler_params=pltpu.CompilerParams(
            dimension_semantics=("arbitrary", "arbitrary"),
            vmem_limit_bytes=48 * 1024 * 1024,
        ),
    )(xb, w1t, w2t, gb)

    if out_p != out_feats:
        out = out[:, :out_feats]
    return out


def init_params(key, in_feats, out_feats):
    """Mirrors nn.Linear / nn.BatchNorm1d defaults.  Also stores the weights
    pre-transposed to (F_in, F_out) and pre-cast to bf16 for the kernel, so the
    forward wrapper does no per-call transpose/cast.  b1/b2 exist for the
    reference but are intentionally not consumed by the kernel (they cancel
    exactly under training-mode BN)."""
    k1, k2, k3, k4 = jax.random.split(key, 4)
    bound1 = 1.0 / math.sqrt(in_feats)
    bound2 = 1.0 / math.sqrt(out_feats)
    w1 = jax.random.uniform(k1, (out_feats, in_feats), jnp.float32, -bound1, bound1)
    w2 = jax.random.uniform(k3, (out_feats, out_feats), jnp.float32, -bound2, bound2)
    return {
        "w1": w1,
        "b1": jax.random.uniform(k2, (out_feats,), jnp.float32, -bound1, bound1),
        "w2": w2,
        "b2": jax.random.uniform(k4, (out_feats,), jnp.float32, -bound2, bound2),
        "gamma1": jnp.ones((out_feats,), jnp.float32),
        "beta1": jnp.zeros((out_feats,), jnp.float32),
        "gamma2": jnp.ones((out_feats,), jnp.float32),
        "beta2": jnp.zeros((out_feats,), jnp.float32),
        "w1t_bf16": w1.T.astype(jnp.bfloat16),
        "w2t_bf16": w2.T.astype(jnp.bfloat16),
    }


def mlp_reference(x, p, matmul_dtype=jnp.float32):
    """Pure-JAX reference with PyTorch semantics (biases included, two-pass
    biased variance).  matmul_dtype=bf16 mirrors the kernel's MXU precision."""
    dt = matmul_dtype
    h = jnp.dot(x.astype(dt), p["w1"].T.astype(dt),
                preferred_element_type=jnp.float32) + p["b1"]
    m, v = h.mean(0), ((h - h.mean(0)) ** 2).mean(0)
    h = (h - m) / jnp.sqrt(v + EPS) * p["gamma1"] + p["beta1"]
    h = jnp.maximum(h, 0.0)
    y = jnp.dot(h.astype(dt), p["w2"].T.astype(dt),
                preferred_element_type=jnp.float32) + p["b2"]
    m, v = y.mean(0), ((y - y.mean(0)) ** 2).mean(0)
    return (y - m) / jnp.sqrt(v + EPS) * p["gamma2"] + p["beta2"]


if __name__ == "__main__":
    key = jax.random.PRNGKey(0)
    kx, kp = jax.random.split(key)

    # Small but lane-dense shapes (feature dims multiples of 128).
    N, IN_FEATS, OUT_FEATS = 256, 128, 256
    x = jax.random.normal(kx, (N, IN_FEATS), jnp.float32)
    params = init_params(kp, IN_FEATS, OUT_FEATS)

    # tile_n=128 -> 2 N-tiles: exercises the cross-tile BN stat accumulation.
    out = mlp_forward(x, params, tile_n=128)
    out = jax.block_until_ready(out)
    assert out.shape == (N, OUT_FEATS)

    # Tight check against a reference that mirrors the bf16 matmul precision.
    ref_bf16 = mlp_reference(x, params, matmul_dtype=jnp.bfloat16)
    assert jnp.allclose(out, ref_bf16, atol=1e-2, rtol=1e-2), "bf16-ref mismatch"

    # Looser check against the full-f32 PyTorch-semantics reference
    # (BN output has unit variance, so 0.1 abs is ~10% of one sigma).
    ref_f32 = mlp_reference(x, params, matmul_dtype=jnp.float32)
    assert jnp.allclose(out, ref_f32, atol=1e-1, rtol=1e-1), "f32-ref mismatch"

    print("KERNEL_OK")
</pallas_src>

<mosaic_0001>
module attributes {stable_mosaic.version = 11 : i64} {
  func.func @mlp_kernel(%arg0: i32, %arg1: i32, %arg2: memref<128x128xbf16, #tpu.memory_space<vmem>>, %arg3: memref<128x256xbf16, #tpu.memory_space<vmem>>, %arg4: memref<256x256xbf16, #tpu.memory_space<vmem>>, %arg5: memref<4x256xf32, #tpu.memory_space<vmem>>, %arg6: memref<128x256xf32, #tpu.memory_space<vmem>>, %arg7: memref<2x256xf32, #tpu.memory_space<vmem>>, %arg8: memref<2x256xf32, #tpu.memory_space<vmem>>, %arg9: memref<2x256xf32, #tpu.memory_space<vmem>>, %arg10: memref<2x256xf32, #tpu.memory_space<vmem>>) attributes {dimension_semantics = [#tpu.dimension_semantics<arbitrary>, #tpu.dimension_semantics<arbitrary>], iteration_bounds = array<i64: 3, 2>, scalar_prefetch = 0 : i64, scratch_operands = 4 : i64, tpu.core_type = #tpu.core_type<tc>, window_params = [{transform_indices = @transform_0, window_bounds = array<i64: 128, 128>}, {pipeline_mode = #tpu.pipeline_mode<synchronous>, transform_indices = @transform_1, window_bounds = array<i64: 128, 256>}, {pipeline_mode = #tpu.pipeline_mode<synchronous>, transform_indices = @transform_2, window_bounds = array<i64: 256, 256>}, {pipeline_mode = #tpu.pipeline_mode<synchronous>, transform_indices = @transform_3, window_bounds = array<i64: 4, 256>}, {transform_indices = @transform_4, window_bounds = array<i64: 128, 256>}]} {
    %c0_i32 = arith.constant 0 : i32
    %0 = arith.cmpi eq, %arg0, %c0_i32 : i32
    %c0_i32_0 = arith.constant 0 : i32
    %1 = arith.cmpi eq, %arg1, %c0_i32_0 : i32
    %2 = arith.andi %0, %1 : i1
    %3 = arith.extui %2 : i1 to i32
    %c0_i32_1 = arith.constant 0 : i32
    %4 = arith.cmpi ne, %3, %c0_i32_1 : i32
    scf.if %4 {
      %cst_17 = arith.constant 0.000000e+00 : f32
      %27 = vector.broadcast %cst_17 : f32 to vector<2x256xf32>
      %c0_18 = arith.constant 0 : index
      %c0_19 = arith.constant 0 : index
      %28 = vector.load %arg7[%c0_18, %c0_19] : memref<2x256xf32, #tpu.memory_space<vmem>>, vector<2x256xf32>
      tpu.vector_store %arg7[%c0_18, %c0_19], %27 {strides = array<i32>} : memref<2x256xf32, #tpu.memory_space<vmem>>, vector<2x256xf32>,
      %cst_20 = arith.constant 0.000000e+00 : f32
      %29 = vector.broadcast %cst_20 : f32 to vector<2x256xf32>
      %c0_21 = arith.constant 0 : index
      %c0_22 = arith.constant 0 : index
      %30 = vector.load %arg8[%c0_21, %c0_22] : memref<2x256xf32, #tpu.memory_space<vmem>>, vector<2x256xf32>
      tpu.vector_store %arg8[%c0_21, %c0_22], %29 {strides = array<i32>} : memref<2x256xf32, #tpu.memory_space<vmem>>, vector<2x256xf32>,
    } else {
    }
    %c1_i32 = arith.constant 1 : i32
    %5 = arith.cmpi eq, %arg0, %c1_i32 : i32
    %c0_i32_2 = arith.constant 0 : i32
    %6 = arith.cmpi eq, %arg1, %c0_i32_2 : i32
    %7 = arith.andi %5, %6 : i1
    %8 = arith.extui %7 : i1 to i32
    %cst = arith.constant 3.906250e-03 : f32
    %c0_i32_3 = arith.constant 0 : i32
    %9 = arith.cmpi ne, %8, %c0_i32_3 : i32
    scf.if %9 {
      %c0_17 = arith.constant 0 : index
      %c0_18 = arith.constant 0 : index
      %27 = vector.load %arg7[%c0_17, %c0_18] : memref<2x256xf32, #tpu.memory_space<vmem>>, vector<1x256xf32>
      %28 = vector.broadcast %cst : f32 to vector<1x256xf32>
      %29 = arith.mulf %27, %28 : vector<1x256xf32>
      %c1 = arith.constant 1 : index
      %c0_19 = arith.constant 0 : index
      %30 = vector.load %arg7[%c1, %c0_19] : memref<2x256xf32, #tpu.memory_space<vmem>>, vector<1x256xf32>
      %31 = vector.broadcast %cst : f32 to vector<1x256xf32>
      %32 = arith.mulf %30, %31 : vector<1x256xf32>
      %33 = arith.mulf %29, %29 : vector<1x256xf32>
      %34 = arith.subf %32, %33 : vector<1x256xf32>
      %c0_20 = arith.constant 0 : index
      %c0_21 = arith.constant 0 : index
      %35 = vector.load %arg5[%c0_20, %c0_21] : memref<4x256xf32, #tpu.memory_space<vmem>>, vector<1x256xf32>
      %cst_22 = arith.constant 9.99999974E-6 : f32
      %36 = vector.broadcast %cst_22 : f32 to vector<1x256xf32>
      %37 = arith.addf %34, %36 : vector<1x256xf32>
      %38 = math.rsqrt %37 : vector<1x256xf32>
      %39 = arith.mulf %35, %38 : vector<1x256xf32>
      %c0_23 = arith.constant 0 : index
      %c0_24 = arith.constant 0 : index
      %40 = vector.load %arg9[%c0_23, %c0_24] : memref<2x256xf32, #tpu.memory_space<vmem>>, vector<1x256xf32>
      tpu.vector_store %arg9[%c0_23, %c0_24], %39 {strides = array<i32>} : memref<2x256xf32, #tpu.memory_space<vmem>>, vector<1x256xf32>,
      %c1_25 = arith.constant 1 : index
      %c0_26 = arith.constant 0 : index
      %41 = vector.load %arg5[%c1_25, %c0_26] : memref<4x256xf32, #tpu.memory_space<vmem>>, vector<1x256xf32>
      %42 = arith.mulf %29, %39 : vector<1x256xf32>
      %43 = arith.subf %41, %42 : vector<1x256xf32>
      %c1_27 = arith.constant 1 : index
      %c0_28 = arith.constant 0 : index
      %44 = vector.load %arg9[%c1_27, %c0_28] : memref<2x256xf32, #tpu.memory_space<vmem>>, vector<1x256xf32>
      tpu.vector_store %arg9[%c1_27, %c0_28], %43 {strides = array<i32>} : memref<2x256xf32, #tpu.memory_space<vmem>>, vector<1x256xf32>,
    } else {
    }
    %c2_i32 = arith.constant 2 : i32
    %10 = arith.cmpi eq, %arg0, %c2_i32 : i32
    %c0_i32_4 = arith.constant 0 : i32
    %11 = arith.cmpi eq, %arg1, %c0_i32_4 : i32
    %12 = arith.andi %10, %11 : i1
    %13 = arith.extui %12 : i1 to i32
    %cst_5 = arith.constant 3.906250e-03 : f32
    %c0_i32_6 = arith.constant 0 : i32
    %14 = arith.cmpi ne, %13, %c0_i32_6 : i32
    scf.if %14 {
      %c0_17 = arith.constant 0 : index
      %c0_18 = arith.constant 0 : index
      %27 = vector.load %arg8[%c0_17, %c0_18] : memref<2x256xf32, #tpu.memory_space<vmem>>, vector<1x256xf32>
      %28 = vector.broadcast %cst_5 : f32 to vector<1x256xf32>
      %29 = arith.mulf %27, %28 : vector<1x256xf32>
      %c1 = arith.constant 1 : index
      %c0_19 = arith.constant 0 : index
      %30 = vector.load %arg8[%c1, %c0_19] : memref<2x256xf32, #tpu.memory_space<vmem>>, vector<1x256xf32>
      %31 = vector.broadcast %cst_5 : f32 to vector<1x256xf32>
      %32 = arith.mulf %30, %31 : vector<1x256xf32>
      %33 = arith.mulf %29, %29 : vector<1x256xf32>
      %34 = arith.subf %32, %33 : vector<1x256xf32>
      %c2 = arith.constant 2 : index
      %c0_20 = arith.constant 0 : index
      %35 = vector.load %arg5[%c2, %c0_20] : memref<4x256xf32, #tpu.memory_space<vmem>>, vector<1x256xf32>
      %cst_21 = arith.constant 9.99999974E-6 : f32
      %36 = vector.broadcast %cst_21 : f32 to vector<1x256xf32>
      %37 = arith.addf %34, %36 : vector<1x256xf32>
      %38 = math.rsqrt %37 : vector<1x256xf32>
      %39 = arith.mulf %35, %38 : vector<1x256xf32>
      %c0_22 = arith.constant 0 : index
      %c0_23 = arith.constant 0 : index
      %40 = vector.load %arg10[%c0_22, %c0_23] : memref<2x256xf32, #tpu.memory_space<vmem>>, vector<1x256xf32>
      tpu.vector_store %arg10[%c0_22, %c0_23], %39 {strides = array<i32>} : memref<2x256xf32, #tpu.memory_space<vmem>>, vector<1x256xf32>,
      %c3 = arith.constant 3 : index
      %c0_24 = arith.constant 0 : index
      %41 = vector.load %arg5[%c3, %c0_24] : memref<4x256xf32, #tpu.memory_space<vmem>>, vector<1x256xf32>
      %42 = arith.mulf %29, %39 : vector<1x256xf32>
      %43 = arith.subf %41, %42 : vector<1x256xf32>
      %c1_25 = arith.constant 1 : index
      %c0_26 = arith.constant 0 : index
      %44 = vector.load %arg10[%c1_25, %c0_26] : memref<2x256xf32, #tpu.memory_space<vmem>>, vector<1x256xf32>
      tpu.vector_store %arg10[%c1_25, %c0_26], %43 {strides = array<i32>} : memref<2x256xf32, #tpu.memory_space<vmem>>, vector<1x256xf32>,
    } else {
    }
    %c0 = arith.constant 0 : index
    %c0_7 = arith.constant 0 : index
    %15 = vector.load %arg2[%c0, %c0_7] : memref<128x128xbf16, #tpu.memory_space<vmem>>, vector<128x128xbf16>
    %c0_8 = arith.constant 0 : index
    %c0_9 = arith.constant 0 : index
    %16 = vector.load %arg3[%c0_8, %c0_9] : memref<128x256xbf16, #tpu.memory_space<vmem>>, vector<128x256xbf16>
    %cst_10 = arith.constant dense<0.000000e+00> : vector<128x256xf32>
    %17 = tpu.matmul %15, %16, %cst_10 {dimension_numbers = #tpu.dot_dimension_numbers<[1], [0], [0], [1], [0, 0, 1, 1], [], []>} : vector<128x128xbf16>, vector<128x256xbf16>, vector<128x256xf32> -> vector<128x256xf32>
    %c0_i32_11 = arith.constant 0 : i32
    %18 = arith.cmpi eq, %arg0, %c0_i32_11 : i32
    %19 = arith.extui %18 : i1 to i32
    %c0_i32_12 = arith.constant 0 : i32
    %20 = arith.cmpi ne, %19, %c0_i32_12 : i32
    scf.if %20 {
      %c0_17 = arith.constant 0 : index
      %c0_18 = arith.constant 0 : index
      %27 = vector.load %arg7[%c0_17, %c0_18] : memref<2x256xf32, #tpu.memory_space<vmem>>, vector<1x256xf32>
      %cst_19 = arith.constant dense<0.000000e+00> : vector<256xf32>
      %28 = vector.multi_reduction <add>, %17, %cst_19 [0] : vector<128x256xf32> to vector<256xf32>
      %29 = vector.shape_cast %28 : vector<256xf32> to vector<1x256xf32>
      %30 = arith.addf %27, %29 : vector<1x256xf32>
      %c0_20 = arith.constant 0 : index
      %c0_21 = arith.constant 0 : index
      %31 = vector.load %arg7[%c0_20, %c0_21] : memref<2x256xf32, #tpu.memory_space<vmem>>, vector<1x256xf32>
      tpu.vector_store %arg7[%c0_20, %c0_21], %30 {strides = array<i32>} : memref<2x256xf32, #tpu.memory_space<vmem>>, vector<1x256xf32>,
      %c1 = arith.constant 1 : index
      %c0_22 = arith.constant 0 : index
      %32 = vector.load %arg7[%c1, %c0_22] : memref<2x256xf32, #tpu.memory_space<vmem>>, vector<1x256xf32>
      %33 = arith.mulf %17, %17 : vector<128x256xf32>
      %cst_23 = arith.constant dense<0.000000e+00> : vector<256xf32>
      %34 = vector.multi_reduction <add>, %33, %cst_23 [0] : vector<128x256xf32> to vector<256xf32>
      %35 = vector.shape_cast %34 : vector<256xf32> to vector<1x256xf32>
      %36 = arith.addf %32, %35 : vector<1x256xf32>
      %c1_24 = arith.constant 1 : index
      %c0_25 = arith.constant 0 : index
      %37 = vector.load %arg7[%c1_24, %c0_25] : memref<2x256xf32, #tpu.memory_space<vmem>>, vector<1x256xf32>
      tpu.vector_store %arg7[%c1_24, %c0_25], %36 {strides = array<i32>} : memref<2x256xf32, #tpu.memory_space<vmem>>, vector<1x256xf32>,
    } else {
    }
    %c1_i32_13 = arith.constant 1 : i32
    %21 = arith.cmpi eq, %arg0, %c1_i32_13 : i32
    %22 = arith.extui %21 : i1 to i32
    %c0_i32_14 = arith.constant 0 : i32
    %23 = arith.cmpi ne, %22, %c0_i32_14 : i32
    scf.if %23 {
      %c0_17 = arith.constant 0 : index
      %c0_18 = arith.constant 0 : index
      %27 = vector.load %arg9[%c0_17, %c0_18] : memref<2x256xf32, #tpu.memory_space<vmem>>, vector<1x256xf32>
      %28 = vector.broadcast %27 : vector<1x256xf32> to vector<128x256xf32>
      %29 = arith.mulf %17, %28 : vector<128x256xf32>
      %c1 = arith.constant 1 : index
      %c0_19 = arith.constant 0 : index
      %30 = vector.load %arg9[%c1, %c0_19] : memref<2x256xf32, #tpu.memory_space<vmem>>, vector<1x256xf32>
      %31 = vector.broadcast %30 : vector<1x256xf32> to vector<128x256xf32>
      %32 = arith.addf %29, %31 : vector<128x256xf32>
      %cst_20 = arith.constant 0.000000e+00 : f32
      %33 = vector.broadcast %cst_20 : f32 to vector<128x256xf32>
      %34 = arith.maximumf %32, %33 : vector<128x256xf32>
      %35 = arith.truncf %34 : vector<128x256xf32> to vector<128x256xbf16>
      %c0_21 = arith.constant 0 : index
      %c0_22 = arith.constant 0 : index
      %36 = vector.load %arg4[%c0_21, %c0_22] : memref<256x256xbf16, #tpu.memory_space<vmem>>, vector<256x256xbf16>
      %cst_23 = arith.constant dense<0.000000e+00> : vector<128x256xf32>
      %37 = tpu.matmul %35, %36, %cst_23 {dimension_numbers = #tpu.dot_dimension_numbers<[1], [0], [0], [1], [0, 0, 1, 1], [], []>} : vector<128x256xbf16>, vector<256x256xbf16>, vector<128x256xf32> -> vector<128x256xf32>
      %c0_24 = arith.constant 0 : index
      %c0_25 = arith.constant 0 : index
      %38 = vector.load %arg8[%c0_24, %c0_25] : memref<2x256xf32, #tpu.memory_space<vmem>>, vector<1x256xf32>
      %cst_26 = arith.constant dense<0.000000e+00> : vector<256xf32>
      %39 = vector.multi_reduction <add>, %37, %cst_26 [0] : vector<128x256xf32> to vector<256xf32>
      %40 = vector.shape_cast %39 : vector<256xf32> to vector<1x256xf32>
      %41 = arith.addf %38, %40 : vector<1x256xf32>
      %c0_27 = arith.constant 0 : index
      %c0_28 = arith.constant 0 : index
      %42 = vector.load %arg8[%c0_27, %c0_28] : memref<2x256xf32, #tpu.memory_space<vmem>>, vector<1x256xf32>
      tpu.vector_store %arg8[%c0_27, %c0_28], %41 {strides = array<i32>} : memref<2x256xf32, #tpu.memory_space<vmem>>, vector<1x256xf32>,
      %c1_29 = arith.constant 1 : index
      %c0_30 = arith.constant 0 : index
      %43 = vector.load %arg8[%c1_29, %c0_30] : memref<2x256xf32, #tpu.memory_space<vmem>>, vector<1x256xf32>
      %44 = arith.mulf %37, %37 : vector<128x256xf32>
      %cst_31 = arith.constant dense<0.000000e+00> : vector<256xf32>
      %45 = vector.multi_reduction <add>, %44, %cst_31 [0] : vector<128x256xf32> to vector<256xf32>
      %46 = vector.shape_cast %45 : vector<256xf32> to vector<1x256xf32>
      %47 = arith.addf %43, %46 : vector<1x256xf32>
      %c1_32 = arith.constant 1 : index
      %c0_33 = arith.constant 0 : index
      %48 = vector.load %arg8[%c1_32, %c0_33] : memref<2x256xf32, #tpu.memory_space<vmem>>, vector<1x256xf32>
      tpu.vector_store %arg8[%c1_32, %c0_33], %47 {strides = array<i32>} : memref<2x256xf32, #tpu.memory_space<vmem>>, vector<1x256xf32>,
    } else {
    }
    %c2_i32_15 = arith.constant 2 : i32
    %24 = arith.cmpi eq, %arg0, %c2_i32_15 : i32
    %25 = arith.extui %24 : i1 to i32
    %c0_i32_16 = arith.constant 0 : i32
    %26 = arith.cmpi ne, %25, %c0_i32_16 : i32
    scf.if %26 {
      %c0_17 = arith.constant 0 : index
      %c0_18 = arith.constant 0 : index
      %27 = vector.load %arg9[%c0_17, %c0_18] : memref<2x256xf32, #tpu.memory_space<vmem>>, vector<1x256xf32>
      %28 = vector.broadcast %27 : vector<1x256xf32> to vector<128x256xf32>
      %29 = arith.mulf %17, %28 : vector<128x256xf32>
      %c1 = arith.constant 1 : index
      %c0_19 = arith.constant 0 : index
      %30 = vector.load %arg9[%c1, %c0_19] : memref<2x256xf32, #tpu.memory_space<vmem>>, vector<1x256xf32>
      %31 = vector.broadcast %30 : vector<1x256xf32> to vector<128x256xf32>
      %32 = arith.addf %29, %31 : vector<128x256xf32>
      %cst_20 = arith.constant 0.000000e+00 : f32
      %33 = vector.broadcast %cst_20 : f32 to vector<128x256xf32>
      %34 = arith.maximumf %32, %33 : vector<128x256xf32>
      %35 = arith.truncf %34 : vector<128x256xf32> to vector<128x256xbf16>
      %c0_21 = arith.constant 0 : index
      %c0_22 = arith.constant 0 : index
      %36 = vector.load %arg4[%c0_21, %c0_22] : memref<256x256xbf16, #tpu.memory_space<vmem>>, vector<256x256xbf16>
      %cst_23 = arith.constant dense<0.000000e+00> : vector<128x256xf32>
      %37 = tpu.matmul %35, %36, %cst_23 {dimension_numbers = #tpu.dot_dimension_numbers<[1], [0], [0], [1], [0, 0, 1, 1], [], []>} : vector<128x256xbf16>, vector<256x256xbf16>, vector<128x256xf32> -> vector<128x256xf32>
      %c0_24 = arith.constant 0 : index
      %c0_25 = arith.constant 0 : index
      %38 = vector.load %arg10[%c0_24, %c0_25] : memref<2x256xf32, #tpu.memory_space<vmem>>, vector<1x256xf32>
      %39 = vector.broadcast %38 : vector<1x256xf32> to vector<128x256xf32>
      %40 = arith.mulf %37, %39 : vector<128x256xf32>
      %c1_26 = arith.constant 1 : index
      %c0_27 = arith.constant 0 : index
      %41 = vector.load %arg10[%c1_26, %c0_27] : memref<2x256xf32, #tpu.memory_space<vmem>>, vector<1x256xf32>
      %42 = vector.broadcast %41 : vector<1x256xf32> to vector<128x256xf32>
      %43 = arith.addf %40, %42 : vector<128x256xf32>
      %c0_28 = arith.constant 0 : index
      %c0_29 = arith.constant 0 : index
      %44 = vector.load %arg6[%c0_28, %c0_29] : memref<128x256xf32, #tpu.memory_space<vmem>>, vector<128x256xf32>
      tpu.vector_store %arg6[%c0_28, %c0_29], %43 {strides = array<i32>} : memref<128x256xf32, #tpu.memory_space<vmem>>, vector<128x256xf32>,
    } else {
    }
    return
  }
  func.func @transform_0(%arg0: i32, %arg1: i32) -> (i32, i32) {
    %c0_i32 = arith.constant 0 : i32
    %c0_i32_0 = arith.constant 0 : i32
    return %arg1, %c0_i32 : i32, i32
  }
  func.func @transform_1(%arg0: i32, %arg1: i32) -> (i32, i32) {
    %c0_i32 = arith.constant 0 : i32
    %c0_i32_0 = arith.constant 0 : i32
    %c0_i32_1 = arith.constant 0 : i32
    return %c0_i32, %c0_i32_0 : i32, i32
  }
  func.func @transform_2(%arg0: i32, %arg1: i32) -> (i32, i32) {
    %c0_i32 = arith.constant 0 : i32
    %c0_i32_0 = arith.constant 0 : i32
    %c0_i32_1 = arith.constant 0 : i32
    return %c0_i32, %c0_i32_0 : i32, i32
  }
  func.func @transform_3(%arg0: i32, %arg1: i32) -> (i32, i32) {
    %c0_i32 = arith.constant 0 : i32
    %c0_i32_0 = arith.constant 0 : i32
    %c0_i32_1 = arith.constant 0 : i32
    return %c0_i32, %c0_i32_0 : i32, i32
  }
  func.func @transform_4(%arg0: i32, %arg1: i32) -> (i32, i32) {
    %c0_i32 = arith.constant 0 : i32
    %c0_i32_0 = arith.constant 0 : i32
    return %arg1, %c0_i32 : i32, i32
  }
}

</mosaic_0001>

<llo_original>
// kernel: tpu_custom_call.1
$region0: #{tpu_custom_call.1}
  #allocation0 [shape = 'u32[]', space=smem, size = 0x4, offset = 0x4, fixed_abs, tag = 'smem constant byte address 0x4 - core index']
  #allocation1 [shape = 'u32[72,128]{1,0:T(1,128)}', space=vmem, size = 0x9000, scoped, tag = 'internal scratch']
  #allocation2 [shape = 'f32[2,256]{1,0:T(2,128)}', space=vmem, size = 0x800, scoped, tag = 'scratch operand']
  #allocation3 [shape = 'f32[2,256]{1,0:T(2,128)}', space=vmem, size = 0x800, scoped, tag = 'scratch operand']
  #allocation4 [shape = 'f32[2,256]{1,0:T(2,128)}', space=vmem, size = 0x800, scoped, tag = 'scratch operand']
  #allocation5 [shape = 'f32[2,256]{1,0:T(2,128)}', space=vmem, size = 0x800, scoped, tag = 'scratch operand']
  %s0 = inlined_call_operand.hbm [shape: bf16[256,128], index: 0, kind: input, shape index: {}]
  %s1 = inlined_call_operand.hbm [shape: bf16[128,256], index: 1, kind: input, shape index: {}]
  %s2 = inlined_call_operand.hbm [shape: bf16[256,256], index: 2, kind: input, shape index: {}]
  %s3 = inlined_call_operand.hbm [shape: f32[4,256], index: 3, kind: input, shape index: {}]
  %s4 = inlined_call_operand.hbm [shape: f32[256,256], index: 4, kind: output, shape index: {}]
  %s5 = sld [smem:[#allocation0]]
  $region89: #{tpu_custom_call.1} parent=0
    _
  %s7 = ssub.s32 1, %s5
  %s8 = scalar_select 0, %s7, %s5
  $region1: #{tpu_custom_call.1} parent=0
    #allocation6 [shape = 'u8[65536]{0}', space=vmem, size = 0x10000, scoped, tag = 'input window, operand 0']
    #allocation7 [shape = 's32[2]{0}', space=sflag, size = 0x8, scoped, tag = 'scoped memory for tpu_custom_call.1']
    #allocation8 [shape = 's32[2]{0}', space=sflag, size = 0x8, scoped, tag = 'scoped memory for tpu_custom_call.1']
    #allocation9 [shape = 'u8[65536]{0}', space=vmem, size = 0x10000, scoped, tag = 'input window, operand 1, single buffered']
    #allocation10 [shape = 's32[1]{0}', space=sflag, size = 0x4, scoped, tag = 'scoped memory for tpu_custom_call.1']
    #allocation11 [shape = 'u8[131072]{0}', space=vmem, size = 0x20000, scoped, tag = 'input window, operand 2, single buffered']
    #allocation12 [shape = 'u8[4096]{0}', space=vmem, size = 0x1000, scoped, tag = 'input window, operand 3, single buffered']
    #allocation13 [shape = 's32[1]{0}', space=sflag, size = 0x4, scoped, tag = 'scoped memory for tpu_custom_call.1']
    #allocation14 [shape = 'u8[262144]{0}', space=vmem, size = 0x40000, scoped, tag = 'output window, operand 0']
    %9 = vsyncpa [#allocation7], 0
    %s10 = scalar_lea.sflag [#allocation7], 1
    %11 = vsyncpa %s10, 0
    %12 = vsyncpa [#allocation10], 0
    %13 = vsyncpa [#allocation13], 0
    %14 = vsyncpa [#allocation8], 0
    %s15 = scalar_lea.sflag [#allocation8], 1
    %16 = vsyncpa %s15, 0
    loop: start=0, step=1, limit=8
    $region2: #{tpu_custom_call.1} parent=1 // loop_pre_header
      _
    $region3: #{tpu_custom_call.1} parent=1 // loop_header
      %s18 = sphi 0, %s22
      %p19 = scmp.ge.s32.totalorder %s18, 8
      %s25 = sphi 0, %s37
      %s26 = sphi 0, %s33
      %s27 = sphi 0, %s25
      %s28 = sphi 0, %s26
      %s29 = sphi 0, %s27
      %s30 = sphi 0, %s28
      %s40 = sphi 0, %s42
      %s43 = sphi 0, %s40
      %s44 = sphi 0, %s43
      %s60 = sphi 0, %s44
      %s64 = sphi 0, %s64
      %s66 = sphi 0, %s64
      %s67 = sphi 0, %s66
      %s81 = sphi 0, %s67
      %s85 = sphi 0, %s85
      %s87 = sphi 0, %s85
      %s88 = sphi 0, %s87
      %s102 = sphi 0, %s88
      %s106 = sphi 0, %s106
      %s108 = sphi 0, %s106
      %s109 = sphi 0, %s108
      %s123 = sphi 0, %s109
      %s129 = sphi 0, %s131
      %s132 = sphi 0, %s129
      %s133 = sphi 0, %s132
      %s149 = sphi 0, %s133
    $region4: #{tpu_custom_call.1} parent=1 // loop_header_branch
      %21 = sbr.rel (%p19) target = $region8
    $region5: #{tpu_custom_call.1} parent=1 // loop_body
      %s23 = ssub.s32 %s18, 1
      %s24 = ssub.s32 %s18, 2
      %s31 = sadd.s32 1, %s26
      %p32 = scmp.ge.s32.totalorder %s31, 2
      %s33 = scalar_select %p32, 0, %s31
      %s34 = sadd.s32 1, %s25
      %s35 = scalar_select %p32, %s34, %s25
      %p36 = scmp.ge.s32.totalorder %s35, 3
      %s37 = scalar_select %p36, 0, %s35
      %s38 = ssub.s32 %s26, %s33
      %p39 = scmp.eq.s32.totalorder %s38, 0
      %s41 = sadd.s32 %s40, 1
      %s42 = scalar_select %p39, %s40, %s41
      %p45 = pneg %p39
      %p46 = scmp.eq.s32.totalorder %s18, 5
      %p47 = por %p45, %p46
      %p48 = scmp.ne.s32.totalorder %s40, %s43
      %p49 = scmp.eq.s32.totalorder %s18, 0
      %p50 = por %p48, %p49
      %p51 = scmp.ne.s32.totalorder %s40, %s43
      %p52 = scmp.eq.s32.totalorder %s23, 5
      %p53 = por %p51, %p52
      %p54 = scmp.ne.s32.totalorder %s43, %s44
      %p55 = scmp.eq.s32.totalorder %s23, 0
      %p56 = por %p54, %p55
      %p57 = scmp.ne.s32.totalorder %s43, %s44
      %p58 = scmp.eq.s32.totalorder %s24, 5
      %p59 = por %p57, %p58
      %p61 = scmp.ne.s32.totalorder %s44, %s60
      %p62 = scmp.eq.s32.totalorder %s24, 0
      %p63 = por %p61, %p62
      %s65 = sadd.s32 %s64, 1
      %p68 = scmp.eq.s32.totalorder %s18, 5
      %p69 = scmp.ne.s32.totalorder %s64, %s66
      %p70 = scmp.eq.s32.totalorder %s18, 0
      %p71 = por %p69, %p70
      %p72 = scmp.ne.s32.totalorder %s64, %s66
      %p73 = scmp.eq.s32.totalorder %s23, 5
      %p74 = por %p72, %p73
      %p75 = scmp.ne.s32.totalorder %s66, %s67
      %p76 = scmp.eq.s32.totalorder %s23, 0
      %p77 = por %p75, %p76
      %p78 = scmp.ne.s32.totalorder %s66, %s67
      %p79 = scmp.eq.s32.totalorder %s24, 5
      %p80 = por %p78, %p79
      %p82 = scmp.ne.s32.totalorder %s67, %s81
      %p83 = scmp.eq.s32.totalorder %s24, 0
      %p84 = por %p82, %p83
      %s86 = sadd.s32 %s85, 1
      %p89 = scmp.eq.s32.totalorder %s18, 5
      %p90 = scmp.ne.s32.totalorder %s85, %s87
      %p91 = scmp.eq.s32.totalorder %s18, 0
      %p92 = por %p90, %p91
      %p93 = scmp.ne.s32.totalorder %s85, %s87
      %p94 = scmp.eq.s32.totalorder %s23, 5
      %p95 = por %p93, %p94
      %p96 = scmp.ne.s32.totalorder %s87, %s88
      %p97 = scmp.eq.s32.totalorder %s23, 0
      %p98 = por %p96, %p97
      %p99 = scmp.ne.s32.totalorder %s87, %s88
      %p100 = scmp.eq.s32.totalorder %s24, 5
      %p101 = por %p99, %p100
      %p103 = scmp.ne.s32.totalorder %s88, %s102
      %p104 = scmp.eq.s32.totalorder %s24, 0
      %p105 = por %p103, %p104
      %s107 = sadd.s32 %s106, 1
      %p110 = scmp.eq.s32.totalorder %s18, 5
      %p111 = scmp.ne.s32.totalorder %s106, %s108
      %p112 = scmp.eq.s32.totalorder %s18, 0
      %p113 = por %p111, %p112
      %p114 = scmp.ne.s32.totalorder %s106, %s108
      %p115 = scmp.eq.s32.totalorder %s23, 5
      %p116 = por %p114, %p115
      %p117 = scmp.ne.s32.totalorder %s108, %s109
      %p118 = scmp.eq.s32.totalorder %s23, 0
      %p119 = por %p117, %p118
      %p120 = scmp.ne.s32.totalorder %s108, %s109
      %p121 = scmp.eq.s32.totalorder %s24, 5
      %p122 = por %p120, %p121
      %p124 = scmp.ne.s32.totalorder %s109, %s123
      %p125 = scmp.eq.s32.totalorder %s24, 0
      %p126 = por %p124, %p125
      %s127 = ssub.s32 %s26, %s33
      %p128 = scmp.eq.s32.totalorder %s127, 0
      %s130 = sadd.s32 %s129, 1
      %s131 = scalar_select %p128, %s129, %s130
      %p134 = pneg %p128
      %p135 = scmp.eq.s32.totalorder %s18, 5
      %p136 = por %p134, %p135
      %p137 = scmp.ne.s32.totalorder %s129, %s132
      %p138 = scmp.eq.s32.totalorder %s18, 0
      %p139 = por %p137, %p138
      %p140 = scmp.ne.s32.totalorder %s129, %s132
      %p141 = scmp.eq.s32.totalorder %s23, 5
      %p142 = por %p140, %p141
      %p143 = scmp.ne.s32.totalorder %s132, %s133
      %p144 = scmp.eq.s32.totalorder %s23, 0
      %p145 = por %p143, %p144
      %p146 = scmp.ne.s32.totalorder %s132, %s133
      %p147 = scmp.eq.s32.totalorder %s24, 5
      %p148 = por %p146, %p147
      %p150 = scmp.ne.s32.totalorder %s133, %s149
      %p151 = scmp.eq.s32.totalorder %s24, 0
      %p152 = por %p150, %p151
      %p153 = scmp.le.s32.totalorder 1, %s18
      %p154 = scmp.lt.s32.totalorder %s18, 7
      %p155 = pnand %p153, %p154
      %p156 = pneg %p155
      // Predicated region
      $region9: #{tpu_custom_call.1} parent=5 // pred_check
        _
      $region10: #{tpu_custom_call.1} parent=5 // pred_check_branch
        %158 = sbr.rel (%p155) target = $region12
      $region11: #{tpu_custom_call.1} parent=5 // pred_region
        %s159 = ssub.s32 %s18, 1
        // Predicated region
        $region13: #{tpu_custom_call.1} parent=11 // pred_check
          %p160 = pneg %p77
        $region14: #{tpu_custom_call.1} parent=11 // pred_check_branch
          %162 = sbr.rel (%p160) target = $region16
        $region15: #{tpu_custom_call.1} parent=11 // pred_region
          %164 = vsyncadd [#allocation10], 0
          %s165 = sshll.u32 %s1, 4
          %s166 = int_to_ptr.hbm [resolvable:$true] %s165
          %s167 = sshll.u32 [#allocation9], 4
          %s168 = int_to_ptr.vmem [resolvable:$true] %s167
          %173 = dma.hbm_to_vmem [thread:$0]  %s166, 2048, %s168, [#allocation10], 128, 128, 8
        $region16: #{tpu_custom_call.1} parent=11 // pred_fallthru
          _
        // Predicated region
        $region17: #{tpu_custom_call.1} parent=11 // pred_check
          %p174 = pneg %p98
        $region18: #{tpu_custom_call.1} parent=11 // pred_check_branch
          %176 = sbr.rel (%p174) target = $region20
        $region19: #{tpu_custom_call.1} parent=11 // pred_region
          %178 = vsyncadd [#allocation10], 0
          %s179 = sshll.u32 %s2, 4
          %s180 = int_to_ptr.hbm [resolvable:$true] %s179
          %s181 = sshll.u32 [#allocation11], 4
          %s182 = int_to_ptr.vmem [resolvable:$true] %s181
          %187 = dma.hbm_to_vmem [thread:$0]  %s180, 4096, %s182, [#allocation10], 128, 128, 8
        $region20: #{tpu_custom_call.1} parent=11 // pred_fallthru
          _
        // Predicated region
        $region21: #{tpu_custom_call.1} parent=11 // pred_check
          %p188 = pneg %p119
        $region22: #{tpu_custom_call.1} parent=11 // pred_check_branch
          %190 = sbr.rel (%p188) target = $region24
        $region23: #{tpu_custom_call.1} parent=11 // pred_region
          %192 = vsyncadd [#allocation13], 0
          %s194 = sshll.u32 %s3, 4
          %s195 = int_to_ptr.hbm [resolvable:$true] %s194
          %s196 = sshll.u32 [#allocation12], 4
          %s197 = int_to_ptr.vmem [resolvable:$true] %s196
          %199 = dma.hbm_to_vmem [thread:$0]  %s195, 128, %s197, [#allocation13]
        $region24: #{tpu_custom_call.1} parent=11 // pred_fallthru
          _
      $region12: #{tpu_custom_call.1} parent=5 // pred_fallthru
        _
      %p200 = scmp.lt.s32.totalorder %s18, 6
      // Predicated region
      $region25: #{tpu_custom_call.1} parent=5 // pred_check
        %p201 = pneg %p200
      $region26: #{tpu_custom_call.1} parent=5 // pred_check_branch
        %203 = sbr.rel (%p201) target = $region28
      $region27: #{tpu_custom_call.1} parent=5 // pred_region
        // Predicated region
        $region29: #{tpu_custom_call.1} parent=27 // pred_check
          %p204 = pneg %p50
        $region30: #{tpu_custom_call.1} parent=27 // pred_check_branch
          %206 = sbr.rel (%p204) target = $region32
        $region31: #{tpu_custom_call.1} parent=27 // pred_region
          %s207 = sand.u32 %s40, 1
          %s208 = scalar_lea.sflag [#allocation7], %s207
          %s209 = sand.u32 %s40, 1
          %s210 = smul.addr %s209, 64
          %s211 = scalar_lea.vmem [#allocation6], %s210
          %s212 = smul.u32 16, %s26
          %214 = vsyncadd %s208, 0
          %s215 = smul.addr %s212, 4
          %s216 = scalar_lea.hbm %s0, %s215
          %s217 = sshll.u32 %s216, 4
          %s218 = int_to_ptr.hbm [resolvable:$true] %s217
          %s219 = sshll.u32 %s211, 4
          %s220 = int_to_ptr.vmem [resolvable:$true] %s219
          %225 = dma.hbm_to_vmem [thread:$0]  %s218, 1024, %s220, %s208, 64, 64, 4
        $region32: #{tpu_custom_call.1} parent=27 // pred_fallthru
          _
      $region28: #{tpu_custom_call.1} parent=5 // pred_fallthru
        _
      %p226 = scmp.le.s32.totalorder 1, %s18
      %p227 = scmp.lt.s32.totalorder %s18, 7
      %p228 = pnand %p226, %p227
      %p229 = pneg %p228
      // Predicated region
      $region33: #{tpu_custom_call.1} parent=5 // pred_check
        _
      $region34: #{tpu_custom_call.1} parent=5 // pred_check_branch
        %231 = sbr.rel (%p228) target = $region36
      $region35: #{tpu_custom_call.1} parent=5 // pred_region
        %s232 = ssub.s32 %s18, 1
        %s233 = sand.u32 %s43, 1
        %s234 = scalar_lea.sflag [#allocation7], %s233
        %s235 = sand.u32 %s43, 1
        %s236 = smul.addr %s235, 64
        %s237 = scalar_lea.vmem [#allocation6], %s236
        // Predicated region
        $region37: #{tpu_custom_call.1} parent=35 // pred_check
          %p238 = pneg %p56
        $region38: #{tpu_custom_call.1} parent=35 // pred_check_branch
          %240 = sbr.rel (%p238) target = $region40
        $region39: #{tpu_custom_call.1} parent=35 // pred_region
          %242 = dma.done %s234, 1024
        $region40: #{tpu_custom_call.1} parent=35 // pred_fallthru
          _
        // Predicated region
        $region41: #{tpu_custom_call.1} parent=35 // pred_check
          %p243 = pneg %p77
        $region42: #{tpu_custom_call.1} parent=35 // pred_check_branch
          %245 = sbr.rel (%p243) target = $region44
        $region43: #{tpu_custom_call.1} parent=35 // pred_region
          %247 = dma.done [#allocation10], 2048
        $region44: #{tpu_custom_call.1} parent=35 // pred_fallthru
          _
        // Predicated region
        $region45: #{tpu_custom_call.1} parent=35 // pred_check
          %p248 = pneg %p98
        $region46: #{tpu_custom_call.1} parent=35 // pred_check_branch
          %250 = sbr.rel (%p248) target = $region48
        $region47: #{tpu_custom_call.1} parent=35 // pred_region
          %252 = dma.done [#allocation10], 4096
        $region48: #{tpu_custom_call.1} parent=35 // pred_fallthru
          _
        // Predicated region
        $region49: #{tpu_custom_call.1} parent=35 // pred_check
          %p253 = pneg %p119
        $region50: #{tpu_custom_call.1} parent=35 // pred_check_branch
          %255 = sbr.rel (%p253) target = $region52
        $region51: #{tpu_custom_call.1} parent=35 // pred_region
          %257 = dma.done [#allocation13], 128
        $region52: #{tpu_custom_call.1} parent=35 // pred_fallthru
          _
        %s258 = sand.u32 %s43, 1
        %s259 = scalar_lea.sflag [#allocation7], %s258
        %s260 = sand.u32 %s43, 1
        %s261 = smul.addr %s260, 64
        %s262 = scalar_lea.vmem [#allocation6], %s261
        %p263 = pneg %p56
        %p264 = pneg %p53
        %p265 = pneg %p77
        %p266 = pneg %p74
        %p267 = pneg %p98
        %p268 = pneg %p95
        %p269 = pneg %p119
        %p270 = pneg %p116
        %p271 = pneg %p145
        %p272 = pneg %p142
        %s273 = sand.u32 %s132, 1
        %s274 = scalar_lea.sflag [#allocation8], %s273
        %s275 = sand.u32 %s132, 1
        %s276 = smul.addr %s275, 256
        %s277 = scalar_lea.vmem [#allocation14], %s276
        %s278 = smul.u32 16, %s28
        %s279 = smul.u32 16, %s28
        %p280 = scmp.eq.s32.totalorder %s27, 0
        %p281 = scmp.eq.s32.totalorder %s28, 0
        %p282 = pnand %p280, %p281
        %p283 = pneg %p282
        // Predicated region
        $region53: #{tpu_custom_call.1} parent=35 // pred_check
          _
        $region54: #{tpu_custom_call.1} parent=35 // pred_check_branch
          %285 = sbr.rel (%p282) target = $region56
        $region55: #{tpu_custom_call.1} parent=35 // pred_region
          %286 = vst [vmem:[#allocation2] sm:$0xf] 0.0
          %287 = vst [vmem:[#allocation3] sm:$0xf] 0.0
        $region56: #{tpu_custom_call.1} parent=35 // pred_fallthru
          _
        %p288 = scmp.eq.s32.totalorder %s27, 1
        %p289 = pnand %p288, %p281
        %p290 = pneg %p289
        // Predicated region
        $region57: #{tpu_custom_call.1} parent=35 // pred_check
          _
        $region58: #{tpu_custom_call.1} parent=35 // pred_check_branch
          %292 = sbr.rel (%p289) target = $region60
        $region59: #{tpu_custom_call.1} parent=35 // pred_region
          %v293 = vld [vmem:[#allocation2] ss:$2 sm:$0x3]
          %v294 = vmul.f32 %v293, 0.00390625
          %s295 = scalar_lea.vmem [#allocation2], 1
          %v296 = vld [vmem:[%s295] ss:$2 sm:$0x3]
          %v297 = vmul.f32 %v296, 0.00390625
          %v298 = vmul.f32 %v294, %v294
          %v299 = vsub.f32 %v297, %v298
          %v300 = vld [vmem:[#allocation12] ss:$4 sm:$0x3]
          %v301 = vadd.f32 %v299, 1e-05
          %v302 = vrsqrt.pop %v301
          %v303 = vmul.f32 %v302, %v301
          %v304 = vmul.f32 %v303, %v302
          %v305 = vmul.f32 0.5, %v304
          %v306 = vsub.f32 1.5, %v305
          %v307 = vmul.f32 %v302, %v306
          %vm308 = vweird.f32 %v301
          %vm309 = vweird.f32 %v302
          %vm310 = vmor %vm308, %vm309
          %v311 = vsel %vm310, %v302, %v307
          %v312 = vmul.f32 %v300, %v311
          %v313 = vlaneseq
          %vm314 = vcmp.ge.s32.totalorder %v313, 0
          %vm315 = vcmp.lt.s32.totalorder %v313, 256
          %vm316 = vmand %vm314, %vm315
          %317 = vst.msk [vmem:[#allocation4] ss:$2 sm:$0x3] %vm316, %v312
          %s318 = scalar_lea.vmem [#allocation12], 1
          %v319 = vld [vmem:[%s318] ss:$4 sm:$0x3]
          %v320 = vmul.f32 %v294, %v312
          %v321 = vsub.f32 %v319, %v320
          %s322 = scalar_lea.vmem [#allocation4], 1
          %323 = vst.msk [vmem:[%s322] ss:$2 sm:$0x3] %vm316, %v321
        $region60: #{tpu_custom_call.1} parent=35 // pred_fallthru
          _
        %p324 = scmp.eq.s32.totalorder %s27, 2
        %p325 = pnand %p324, %p281
        %p326 = pneg %p325
        // Predicated region
        $region61: #{tpu_custom_call.1} parent=35 // pred_check
          _
        $region62: #{tpu_custom_call.1} parent=35 // pred_check_branch
          %328 = sbr.rel (%p325) target = $region64
        $region63: #{tpu_custom_call.1} parent=35 // pred_region
          %v329 = vld [vmem:[#allocation3] ss:$2 sm:$0x3]
          %v330 = vmul.f32 %v329, 0.00390625
          %s331 = scalar_lea.vmem [#allocation3], 1
          %v332 = vld [vmem:[%s331] ss:$2 sm:$0x3]
          %v333 = vmul.f32 %v332, 0.00390625
          %v334 = vmul.f32 %v330, %v330
          %v335 = vsub.f32 %v333, %v334
          %s336 = scalar_lea.vmem [#allocation12], 2
          %v337 = vld [vmem:[%s336] ss:$4 sm:$0x3]
          %v338 = vadd.f32 %v335, 1e-05
          %v339 = vrsqrt.pop %v338
          %v340 = vmul.f32 %v339, %v338
          %v341 = vmul.f32 %v340, %v339
          %v342 = vmul.f32 0.5, %v341
          %v343 = vsub.f32 1.5, %v342
          %v344 = vmul.f32 %v339, %v343
          %vm345 = vweird.f32 %v338
          %vm346 = vweird.f32 %v339
          %vm347 = vmor %vm345, %vm346
          %v348 = vsel %vm347, %v339, %v344
          %v349 = vmul.f32 %v337, %v348
          %v350 = vlaneseq
          %vm351 = vcmp.ge.s32.totalorder %v350, 0
          %vm352 = vcmp.lt.s32.totalorder %v350, 256
          %vm353 = vmand %vm351, %vm352
          %354 = vst.msk [vmem:[#allocation5] ss:$2 sm:$0x3] %vm353, %v349
          %s355 = scalar_lea.vmem [#allocation12], 3
          %v356 = vld [vmem:[%s355] ss:$4 sm:$0x3]
          %v357 = vmul.f32 %v330, %v349
          %v358 = vsub.f32 %v356, %v357
          %s359 = scalar_lea.vmem [#allocation5], 1
          %360 = vst.msk [vmem:[%s359] ss:$2 sm:$0x3] %vm353, %v358
        $region64: #{tpu_custom_call.1} parent=35 // pred_fallthru
          _
        %v361 = vld [vmem:[%s237] sm:$0xf]
        %v362 = vld [vmem:[%s237 + $0x4] sm:$0xf]
        %v363 = vld [vmem:[%s237 + $0x8] sm:$0xf]
        %v364 = vld [vmem:[%s237 + $0xc] sm:$0xf]
        %v365 = vld [vmem:[%s237 + $0x10] sm:$0xf]
        %v366 = vld [vmem:[%s237 + $0x14] sm:$0xf]
        %v367 = vld [vmem:[%s237 + $0x18] sm:$0xf]
        %v368 = vld [vmem:[%s237 + $0x1c] sm:$0xf]
        %v369 = vld [vmem:[%s237 + $0x20] sm:$0xf]
        %v370 = vld [vmem:[%s237 + $0x24] sm:$0xf]
        %v371 = vld [vmem:[%s237 + $0x28] sm:$0xf]
        %v372 = vld [vmem:[%s237 + $0x2c] sm:$0xf]
        %v373 = vld [vmem:[%s237 + $0x30] sm:$0xf]
        %v374 = vld [vmem:[%s237 + $0x34] sm:$0xf]
        %v375 = vld [vmem:[%s237 + $0x38] sm:$0xf]
        %v376 = vld [vmem:[%s237 + $0x3c] sm:$0xf]
        %v377 = vld [vmem:[#allocation9] sm:$0xff]
        %v378 = vld [vmem:[#allocation9 + $0x8] sm:$0xff]
        %v379 = vld [vmem:[#allocation9 + $0x10] sm:$0xff]
        %v380 = vld [vmem:[#allocation9 + $0x18] sm:$0xff]
        %v381 = vld [vmem:[#allocation9 + $0x20] sm:$0xff]
        %v382 = vld [vmem:[#allocation9 + $0x28] sm:$0xff]
        %v383 = vld [vmem:[#allocation9 + $0x30] sm:$0xff]
        %v384 = vld [vmem:[#allocation9 + $0x38] sm:$0xff]
        %v385 = vld [vmem:[#allocation9 + $0x40] sm:$0xff]
        %v386 = vld [vmem:[#allocation9 + $0x48] sm:$0xff]
        %v387 = vld [vmem:[#allocation9 + $0x50] sm:$0xff]
        %v388 = vld [vmem:[#allocation9 + $0x58] sm:$0xff]
        %v389 = vld [vmem:[#allocation9 + $0x60] sm:$0xff]
        %v390 = vld [vmem:[#allocation9 + $0x68] sm:$0xff]
        %v391 = vld [vmem:[#allocation9 + $0x70] sm:$0xff]
        %v392 = vld [vmem:[#allocation9 + $0x78] sm:$0xff]
        %v409 = vunpack.c.l.b16 %v361
        %v410 = vunpack.c.l.b16 %v362
        %v411 = vunpack.c.l.b16 %v363
        %v412 = vunpack.c.l.b16 %v364
        %v413 = vunpack.c.l.b16 %v365
        %v414 = vunpack.c.l.b16 %v366
        %v415 = vunpack.c.l.b16 %v367
        %v416 = vunpack.c.l.b16 %v368
        %v417 = vunpack.c.l.b16 %v369
        %v418 = vunpack.c.l.b16 %v370
        %v419 = vunpack.c.l.b16 %v371
        %v420 = vunpack.c.l.b16 %v372
        %v421 = vunpack.c.l.b16 %v373
        %v422 = vunpack.c.l.b16 %v374
        %v423 = vunpack.c.l.b16 %v375
        %v424 = vunpack.c.l.b16 %v376
        %v425 = vpack.c.b16 %v410, %v409
        %v426 = vpack.c.b16 %v412, %v411
        %v427 = vpack.c.b16 %v414, %v413
        %v428 = vpack.c.b16 %v416, %v415
        %v429 = vpack.c.b16 %v418, %v417
        %v430 = vpack.c.b16 %v420, %v419
        %v431 = vpack.c.b16 %v422, %v421
        %v432 = vpack.c.b16 %v424, %v423
        %v457 = vunpack.c.l.b16 %v377
        %v458 = vunpack.c.h.b16 %v377
        %v459 = vunpack.c.l.b16 %v378
        %v460 = vunpack.c.h.b16 %v378
        %v461 = vunpack.c.l.b16 %v379
        %v462 = vunpack.c.h.b16 %v379
        %v463 = vunpack.c.l.b16 %v380
        %v464 = vunpack.c.h.b16 %v380
        %v465 = vunpack.c.l.b16 %v381
        %v466 = vunpack.c.h.b16 %v381
        %v467 = vunpack.c.l.b16 %v382
        %v468 = vunpack.c.h.b16 %v382
        %v469 = vunpack.c.l.b16 %v383
        %v470 = vunpack.c.h.b16 %v383
        %v471 = vunpack.c.l.b16 %v384
        %v472 = vunpack.c.h.b16 %v384
        %v473 = vunpack.c.l.b16 %v385
        %v474 = vunpack.c.h.b16 %v385
        %v475 = vunpack.c.l.b16 %v386
        %v476 = vunpack.c.h.b16 %v386
        %v477 = vunpack.c.l.b16 %v387
        %v478 = vunpack.c.h.b16 %v387
        %v479 = vunpack.c.l.b16 %v388
        %v480 = vunpack.c.h.b16 %v388
        %v481 = vunpack.c.l.b16 %v389
        %v482 = vunpack.c.h.b16 %v389
        %v483 = vunpack.c.l.b16 %v390
        %v484 = vunpack.c.h.b16 %v390
        %v485 = vunpack.c.l.b16 %v391
        %v486 = vunpack.c.h.b16 %v391
        %v487 = vunpack.c.l.b16 %v392
        %v488 = vunpack.c.h.b16 %v392
        %v489 = vpack.c.b16 %v459, %v457
        %v490 = vpack.c.b16 %v460, %v458
        %v491 = vpack.c.b16 %v463, %v461
        %v492 = vpack.c.b16 %v464, %v462
        %v493 = vpack.c.b16 %v467, %v465
        %v494 = vpack.c.b16 %v468, %v466
        %v495 = vpack.c.b16 %v471, %v469
        %v496 = vpack.c.b16 %v472, %v470
        %v497 = vpack.c.b16 %v475, %v473
        %v498 = vpack.c.b16 %v476, %v474
        %v499 = vpack.c.b16 %v479, %v477
        %v500 = vpack.c.b16 %v480, %v478
        %v501 = vpack.c.b16 %v483, %v481
        %v502 = vpack.c.b16 %v484, %v482
        %v503 = vpack.c.b16 %v487, %v485
        %v504 = vpack.c.b16 %v488, %v486
        %521 = vmatpush.bf16.msra.mxu0 %v503
        %522 = vmatpush.bf16.msra.mxu0 %v501
        %523 = vmatpush.bf16.msra.mxu0 %v499
        %524 = vmatpush.bf16.msra.mxu0 %v497
        %525 = vmatpush.bf16.msra.mxu0 %v495
        %526 = vmatpush.bf16.msra.mxu0 %v493
        %527 = vmatpush.bf16.msra.mxu0 %v491
        %528 = vmatpush.bf16.msra.mxu0 %v489
        %529 = vmatmul.bf16.gmra.mxu0 %v425
        %v530 = vpop.f32.mrf.mxu0
        %v531 = vadd.f32 0.0, %v530
        %v532 = vpop.f32.mrf.mxu0
        %v533 = vadd.f32 0.0, %v532
        %534 = vmatmul.bf16.gmra.mxu0 %v426
        %v535 = vpop.f32.mrf.mxu0
        %v536 = vadd.f32 0.0, %v535
        %v537 = vpop.f32.mrf.mxu0
        %v538 = vadd.f32 0.0, %v537
        %539 = vmatmul.bf16.gmra.mxu0 %v427
        %v540 = vpop.f32.mrf.mxu0
        %v541 = vadd.f32 0.0, %v540
        %v542 = vpop.f32.mrf.mxu0
        %v543 = vadd.f32 0.0, %v542
        %544 = vmatmul.bf16.gmra.mxu0 %v428
        %v545 = vpop.f32.mrf.mxu0
        %v546 = vadd.f32 0.0, %v545
        %v547 = vpop.f32.mrf.mxu0
        %v548 = vadd.f32 0.0, %v547
        %549 = vmatmul.bf16.gmra.mxu0 %v429
        %v550 = vpop.f32.mrf.mxu0
        %v551 = vadd.f32 0.0, %v550
        %v552 = vpop.f32.mrf.mxu0
        %v553 = vadd.f32 0.0, %v552
        %554 = vmatmul.bf16.gmra.mxu0 %v430
        %v555 = vpop.f32.mrf.mxu0
        %v556 = vadd.f32 0.0, %v555
        %v557 = vpop.f32.mrf.mxu0
        %v558 = vadd.f32 0.0, %v557
        %559 = vmatmul.bf16.gmra.mxu0 %v431
        %v560 = vpop.f32.mrf.mxu0
        %v561 = vadd.f32 0.0, %v560
        %v562 = vpop.f32.mrf.mxu0
        %v563 = vadd.f32 0.0, %v562
        %564 = vmatmul.bf16.gmra.mxu0 %v432
        %v565 = vpop.f32.mrf.mxu0
        %v566 = vadd.f32 0.0, %v565
        %v567 = vpop.f32.mrf.mxu0
        %v568 = vadd.f32 0.0, %v567
        %569 = vdwg.mxu0
        %570 = vmatpush.bf16.msra.mxu0 %v504
        %571 = vmatpush.bf16.msra.mxu0 %v502
        %572 = vmatpush.bf16.msra.mxu0 %v500
        %573 = vmatpush.bf16.msra.mxu0 %v498
        %574 = vmatpush.bf16.msra.mxu0 %v496
        %575 = vmatpush.bf16.msra.mxu0 %v494
        %576 = vmatpush.bf16.msra.mxu0 %v492
        %577 = vmatpush.bf16.msra.mxu0 %v490
        %578 = vmatmul.bf16.gmra.mxu0 %v425
        %v579 = vpop.f32.mrf.mxu0
        %v580 = vadd.f32 0.0, %v579
        %v581 = vpop.f32.mrf.mxu0
        %v582 = vadd.f32 0.0, %v581
        %583 = vmatmul.bf16.gmra.mxu0 %v426
        %v584 = vpop.f32.mrf.mxu0
        %v585 = vadd.f32 0.0, %v584
        %v586 = vpop.f32.mrf.mxu0
        %v587 = vadd.f32 0.0, %v586
        %588 = vmatmul.bf16.gmra.mxu0 %v427
        %v589 = vpop.f32.mrf.mxu0
        %v590 = vadd.f32 0.0, %v589
        %v591 = vpop.f32.mrf.mxu0
        %v592 = vadd.f32 0.0, %v591
        %593 = vmatmul.bf16.gmra.mxu0 %v428
        %v594 = vpop.f32.mrf.mxu0
        %v595 = vadd.f32 0.0, %v594
        %v596 = vpop.f32.mrf.mxu0
        %v597 = vadd.f32 0.0, %v596
        %598 = vmatmul.bf16.gmra.mxu0 %v429
        %v599 = vpop.f32.mrf.mxu0
        %v600 = vadd.f32 0.0, %v599
        %v601 = vpop.f32.mrf.mxu0
        %v602 = vadd.f32 0.0, %v601
        %603 = vmatmul.bf16.gmra.mxu0 %v430
        %v604 = vpop.f32.mrf.mxu0
        %v605 = vadd.f32 0.0, %v604
        %v606 = vpop.f32.mrf.mxu0
        %v607 = vadd.f32 0.0, %v606
        %608 = vmatmul.bf16.gmra.mxu0 %v431
        %v609 = vpop.f32.mrf.mxu0
        %v610 = vadd.f32 0.0, %v609
        %v611 = vpop.f32.mrf.mxu0
        %v612 = vadd.f32 0.0, %v611
        %613 = vmatmul.bf16.gmra.mxu0 %v432
        %v614 = vpop.f32.mrf.mxu0
        %v615 = vadd.f32 0.0, %v614
        %v616 = vpop.f32.mrf.mxu0
        %v617 = vadd.f32 0.0, %v616
        %618 = vdwg.mxu0
        // Predicated region
        $region65: #{tpu_custom_call.1} parent=35 // pred_check
          %p619 = pneg %p280
        $region66: #{tpu_custom_call.1} parent=35 // pred_check_branch
          %621 = sbr.rel (%p619) target = $region68
        $region67: #{tpu_custom_call.1} parent=35 // pred_region
          %v622 = vld [vmem:[#allocation2] ss:$2 sm:$0x3]
          %v623 = vadd.f32 %v531, %v533
          %v624 = vadd.f32 %v623, %v536
          %v625 = vadd.f32 %v624, %v538
          %v626 = vadd.f32 %v625, %v541
          %v627 = vadd.f32 %v626, %v543
          %v628 = vadd.f32 %v627, %v546
          %v629 = vadd.f32 %v628, %v548
          %v630 = vadd.f32 %v629, %v551
          %v631 = vadd.f32 %v630, %v553
          %v632 = vadd.f32 %v631, %v556
          %v633 = vadd.f32 %v632, %v558
          %v634 = vadd.f32 %v633, %v561
          %v635 = vadd.f32 %v634, %v563
          %v636 = vadd.f32 %v635, %v566
          %v637 = vadd.f32 %v636, %v568
          %v638 = vrot.slane %v637, 4
          %v639 = vadd.f32 %v637, %v638
          %v640 = vrot.slane %v639, 2
          %v641 = vadd.f32 %v639, %v640
          %v642 = vrot.slane %v641, 1
          %v643 = vadd.f32 %v641, %v642
          %v644 = vadd.f32 %v580, %v582
          %v645 = vadd.f32 %v644, %v585
          %v646 = vadd.f32 %v645, %v587
          %v647 = vadd.f32 %v646, %v590
          %v648 = vadd.f32 %v647, %v592
          %v649 = vadd.f32 %v648, %v595
          %v650 = vadd.f32 %v649, %v597
          %v651 = vadd.f32 %v650, %v600
          %v652 = vadd.f32 %v651, %v602
          %v653 = vadd.f32 %v652, %v605
          %v654 = vadd.f32 %v653, %v607
          %v655 = vadd.f32 %v654, %v610
          %v656 = vadd.f32 %v655, %v612
          %v657 = vadd.f32 %v656, %v615
          %v658 = vadd.f32 %v657, %v617
          %v659 = vrot.slane %v658, 4
          %v660 = vadd.f32 %v658, %v659
          %v661 = vrot.slane %v660, 2
          %v662 = vadd.f32 %v660, %v661
          %v663 = vrot.slane %v662, 1
          %v664 = vadd.f32 %v662, %v663
          %v667 = vrot.slane %v664, 7
          %vm668 = vcmask 1040384
          %v669 = vsel %vm668, %v643, %v667
          %v671 = vadd.f32 %v622, %v669
          %v672 = vlaneseq
          %vm673 = vcmp.ge.s32.totalorder %v672, 0
          %vm674 = vcmp.lt.s32.totalorder %v672, 256
          %vm675 = vmand %vm673, %vm674
          %676 = vst.msk [vmem:[#allocation2] ss:$2 sm:$0x3] %vm675, %v671
          %s677 = scalar_lea.vmem [#allocation2], 1
          %v678 = vld [vmem:[%s677] ss:$2 sm:$0x3]
          %v679 = vmul.f32 %v531, %v531
          %v680 = vmul.f32 %v580, %v580
          %v681 = vmul.f32 %v533, %v533
          %v682 = vmul.f32 %v582, %v582
          %v683 = vmul.f32 %v536, %v536
          %v684 = vmul.f32 %v585, %v585
          %v685 = vmul.f32 %v538, %v538
          %v686 = vmul.f32 %v587, %v587
          %v687 = vmul.f32 %v541, %v541
          %v688 = vmul.f32 %v590, %v590
          %v689 = vmul.f32 %v543, %v543
          %v690 = vmul.f32 %v592, %v592
          %v691 = vmul.f32 %v546, %v546
          %v692 = vmul.f32 %v595, %v595
          %v693 = vmul.f32 %v548, %v548
          %v694 = vmul.f32 %v597, %v597
          %v695 = vmul.f32 %v551, %v551
          %v696 = vmul.f32 %v600, %v600
          %v697 = vmul.f32 %v553, %v553
          %v698 = vmul.f32 %v602, %v602
          %v699 = vmul.f32 %v556, %v556
          %v700 = vmul.f32 %v605, %v605
          %v701 = vmul.f32 %v558, %v558
          %v702 = vmul.f32 %v607, %v607
          %v703 = vmul.f32 %v561, %v561
          %v704 = vmul.f32 %v610, %v610
          %v705 = vmul.f32 %v563, %v563
          %v706 = vmul.f32 %v612, %v612
          %v707 = vmul.f32 %v566, %v566
          %v708 = vmul.f32 %v615, %v615
          %v709 = vmul.f32 %v568, %v568
          %v710 = vmul.f32 %v617, %v617
          %v711 = vadd.f32 %v679, %v681
          %v712 = vadd.f32 %v711, %v683
          %v713 = vadd.f32 %v712, %v685
          %v714 = vadd.f32 %v713, %v687
          %v715 = vadd.f32 %v714, %v689
          %v716 = vadd.f32 %v715, %v691
          %v717 = vadd.f32 %v716, %v693
          %v718 = vadd.f32 %v717, %v695
          %v719 = vadd.f32 %v718, %v697
          %v720 = vadd.f32 %v719, %v699
          %v721 = vadd.f32 %v720, %v701
          %v722 = vadd.f32 %v721, %v703
          %v723 = vadd.f32 %v722, %v705
          %v724 = vadd.f32 %v723, %v707
          %v725 = vadd.f32 %v724, %v709
          %v726 = vrot.slane %v725, 4
          %v727 = vadd.f32 %v725, %v726
          %v728 = vrot.slane %v727, 2
          %v729 = vadd.f32 %v727, %v728
          %v730 = vrot.slane %v729, 1
          %v731 = vadd.f32 %v729, %v730
          %v732 = vadd.f32 %v680, %v682
          %v733 = vadd.f32 %v732, %v684
          %v734 = vadd.f32 %v733, %v686
          %v735 = vadd.f32 %v734, %v688
          %v736 = vadd.f32 %v735, %v690
          %v737 = vadd.f32 %v736, %v692
          %v738 = vadd.f32 %v737, %v694
          %v739 = vadd.f32 %v738, %v696
          %v740 = vadd.f32 %v739, %v698
          %v741 = vadd.f32 %v740, %v700
          %v742 = vadd.f32 %v741, %v702
          %v743 = vadd.f32 %v742, %v704
          %v744 = vadd.f32 %v743, %v706
          %v745 = vadd.f32 %v744, %v708
          %v746 = vadd.f32 %v745, %v710
          %v747 = vrot.slane %v746, 4
          %v748 = vadd.f32 %v746, %v747
          %v749 = vrot.slane %v748, 2
          %v750 = vadd.f32 %v748, %v749
          %v751 = vrot.slane %v750, 1
          %v752 = vadd.f32 %v750, %v751
          %v755 = vrot.slane %v752, 7
          %v756 = vsel %vm668, %v731, %v755
          %v758 = vadd.f32 %v678, %v756
          %759 = vst.msk [vmem:[%s677] ss:$2 sm:$0x3] %vm675, %v758
        $region68: #{tpu_custom_call.1} parent=35 // pred_fallthru
          _
        // Predicated region
        $region69: #{tpu_custom_call.1} parent=35 // pred_check
          %p760 = pneg %p288
        $region70: #{tpu_custom_call.1} parent=35 // pred_check_branch
          %762 = sbr.rel (%p760) target = $region72
        $region71: #{tpu_custom_call.1} parent=35 // pred_region
          %v763 = vld [vmem:[#allocation4] ss:$2 sm:$0x3]
          %v765 = vperm.slane %v763, 0
          %v766 = vperm.slane %v763, 1
          %v769 = vmul.f32 %v531, %v765
          %v770 = vmul.f32 %v580, %v766
          %v771 = vmul.f32 %v533, %v765
          %v772 = vmul.f32 %v582, %v766
          %v773 = vmul.f32 %v536, %v765
          %v774 = vmul.f32 %v585, %v766
          %v775 = vmul.f32 %v538, %v765
          %v776 = vmul.f32 %v587, %v766
          %v777 = vmul.f32 %v541, %v765
          %v778 = vmul.f32 %v590, %v766
          %v779 = vmul.f32 %v543, %v765
          %v780 = vmul.f32 %v592, %v766
          %v781 = vmul.f32 %v546, %v765
          %v782 = vmul.f32 %v595, %v766
          %v783 = vmul.f32 %v548, %v765
          %v784 = vmul.f32 %v597, %v766
          %v785 = vmul.f32 %v551, %v765
          %v786 = vmul.f32 %v600, %v766
          %v787 = vmul.f32 %v553, %v765
          %v788 = vmul.f32 %v602, %v766
          %v789 = vmul.f32 %v556, %v765
          %v790 = vmul.f32 %v605, %v766
          %v791 = vmul.f32 %v558, %v765
          %v792 = vmul.f32 %v607, %v766
          %v793 = vmul.f32 %v561, %v765
          %v794 = vmul.f32 %v610, %v766
          %v795 = vmul.f32 %v563, %v765
          %v796 = vmul.f32 %v612, %v766
          %v797 = vmul.f32 %v566, %v765
          %v798 = vmul.f32 %v615, %v766
          %v799 = vmul.f32 %v568, %v765
          %v800 = vmul.f32 %v617, %v766
          %s801 = scalar_lea.vmem [#allocation4], 1
          %v802 = vld [vmem:[%s801] ss:$2 sm:$0x3]
          %v804 = vperm.slane %v802, 0
          %v805 = vperm.slane %v802, 1
          %v808 = vadd.f32 %v769, %v804
          %v809 = vadd.f32 %v770, %v805
          %v810 = vadd.f32 %v771, %v804
          %v811 = vadd.f32 %v772, %v805
          %v812 = vadd.f32 %v773, %v804
          %v813 = vadd.f32 %v774, %v805
          %v814 = vadd.f32 %v775, %v804
          %v815 = vadd.f32 %v776, %v805
          %v816 = vadd.f32 %v777, %v804
          %v817 = vadd.f32 %v778, %v805
          %v818 = vadd.f32 %v779, %v804
          %v819 = vadd.f32 %v780, %v805
          %v820 = vadd.f32 %v781, %v804
          %v821 = vadd.f32 %v782, %v805
          %v822 = vadd.f32 %v783, %v804
          %v823 = vadd.f32 %v784, %v805
          %v824 = vadd.f32 %v785, %v804
          %v825 = vadd.f32 %v786, %v805
          %v826 = vadd.f32 %v787, %v804
          %v827 = vadd.f32 %v788, %v805
          %v828 = vadd.f32 %v789, %v804
          %v829 = vadd.f32 %v790, %v805
          %v830 = vadd.f32 %v791, %v804
          %v831 = vadd.f32 %v792, %v805
          %v832 = vadd.f32 %v793, %v804
          %v833 = vadd.f32 %v794, %v805
          %v834 = vadd.f32 %v795, %v804
          %v835 = vadd.f32 %v796, %v805
          %v836 = vadd.f32 %v797, %v804
          %v837 = vadd.f32 %v798, %v805
          %v838 = vadd.f32 %v799, %v804
          %v839 = vadd.f32 %v800, %v805
          %v840 = vmax.f32 %v808, 0.0
          %v841 = vmax.f32 %v809, 0.0
          %v842 = vmax.f32 %v810, 0.0
          %v843 = vmax.f32 %v811, 0.0
          %v844 = vmax.f32 %v812, 0.0
          %v845 = vmax.f32 %v813, 0.0
          %v846 = vmax.f32 %v814, 0.0
          %v847 = vmax.f32 %v815, 0.0
          %v848 = vmax.f32 %v816, 0.0
          %v849 = vmax.f32 %v817, 0.0
          %v850 = vmax.f32 %v818, 0.0
          %v851 = vmax.f32 %v819, 0.0
          %v852 = vmax.f32 %v820, 0.0
          %v853 = vmax.f32 %v821, 0.0
          %v854 = vmax.f32 %v822, 0.0
          %v855 = vmax.f32 %v823, 0.0
          %v856 = vmax.f32 %v824, 0.0
          %v857 = vmax.f32 %v825, 0.0
          %v858 = vmax.f32 %v826, 0.0
          %v859 = vmax.f32 %v827, 0.0
          %v860 = vmax.f32 %v828, 0.0
          %v861 = vmax.f32 %v829, 0.0
          %v862 = vmax.f32 %v830, 0.0
          %v863 = vmax.f32 %v831, 0.0
          %v864 = vmax.f32 %v832, 0.0
          %v865 = vmax.f32 %v833, 0.0
          %v866 = vmax.f32 %v834, 0.0
          %v867 = vmax.f32 %v835, 0.0
          %v868 = vmax.f32 %v836, 0.0
          %v869 = vmax.f32 %v837, 0.0
          %v870 = vmax.f32 %v838, 0.0
          %v871 = vmax.f32 %v839, 0.0
          %v872 = vpack.c.bf16 %v842, %v840
          %v873 = vpack.c.bf16 %v843, %v841
          %v874 = vpack.c.bf16 %v846, %v844
          %v875 = vpack.c.bf16 %v847, %v845
          %v876 = vpack.c.bf16 %v850, %v848
          %v877 = vpack.c.bf16 %v851, %v849
          %v878 = vpack.c.bf16 %v854, %v852
          %v879 = vpack.c.bf16 %v855, %v853
          %v880 = vpack.c.bf16 %v858, %v856
          %v881 = vpack.c.bf16 %v859, %v857
          %v882 = vpack.c.bf16 %v862, %v860
          %v883 = vpack.c.bf16 %v863, %v861
          %v884 = vpack.c.bf16 %v866, %v864
          %v885 = vpack.c.bf16 %v867, %v865
          %v886 = vpack.c.bf16 %v870, %v868
          %v887 = vpack.c.bf16 %v871, %v869
          %v888 = vld [vmem:[#allocation11] sm:$0xff]
          %v889 = vld [vmem:[#allocation11 + $0x8] sm:$0xff]
          %v890 = vld [vmem:[#allocation11 + $0x10] sm:$0xff]
          %v891 = vld [vmem:[#allocation11 + $0x18] sm:$0xff]
          %v892 = vld [vmem:[#allocation11 + $0x20] sm:$0xff]
          %v893 = vld [vmem:[#allocation11 + $0x28] sm:$0xff]
          %v894 = vld [vmem:[#allocation11 + $0x30] sm:$0xff]
          %v895 = vld [vmem:[#allocation11 + $0x38] sm:$0xff]
          %v896 = vld [vmem:[#allocation11 + $0x40] sm:$0xff]
          %v897 = vld [vmem:[#allocation11 + $0x48] sm:$0xff]
          %v898 = vld [vmem:[#allocation11 + $0x50] sm:$0xff]
          %v899 = vld [vmem:[#allocation11 + $0x58] sm:$0xff]
          %v900 = vld [vmem:[#allocation11 + $0x60] sm:$0xff]
          %v901 = vld [vmem:[#allocation11 + $0x68] sm:$0xff]
          %v902 = vld [vmem:[#allocation11 + $0x70] sm:$0xff]
          %v903 = vld [vmem:[#allocation11 + $0x78] sm:$0xff]
          %v904 = vld [vmem:[#allocation11 + $0x80] sm:$0xff]
          %v905 = vld [vmem:[#allocation11 + $0x88] sm:$0xff]
          %v906 = vld [vmem:[#allocation11 + $0x90] sm:$0xff]
          %v907 = vld [vmem:[#allocation11 + $0x98] sm:$0xff]
          %v908 = vld [vmem:[#allocation11 + $0xa0] sm:$0xff]
          %v909 = vld [vmem:[#allocation11 + $0xa8] sm:$0xff]
          %v910 = vld [vmem:[#allocation11 + $0xb0] sm:$0xff]
          %v911 = vld [vmem:[#allocation11 + $0xb8] sm:$0xff]
          %v912 = vld [vmem:[#allocation11 + $0xc0] sm:$0xff]
          %v913 = vld [vmem:[#allocation11 + $0xc8] sm:$0xff]
          %v914 = vld [vmem:[#allocation11 + $0xd0] sm:$0xff]
          %v915 = vld [vmem:[#allocation11 + $0xd8] sm:$0xff]
          %v916 = vld [vmem:[#allocation11 + $0xe0] sm:$0xff]
          %v917 = vld [vmem:[#allocation11 + $0xe8] sm:$0xff]
          %v918 = vld [vmem:[#allocation11 + $0xf0] sm:$0xff]
          %v919 = vld [vmem:[#allocation11 + $0xf8] sm:$0xff]
          %v952 = vunpack.c.l.b16 %v888
          %v953 = vunpack.c.h.b16 %v888
          %v954 = vunpack.c.l.b16 %v889
          %v955 = vunpack.c.h.b16 %v889
          %v956 = vunpack.c.l.b16 %v890
          %v957 = vunpack.c.h.b16 %v890
          %v958 = vunpack.c.l.b16 %v891
          %v959 = vunpack.c.h.b16 %v891
          %v960 = vunpack.c.l.b16 %v892
          %v961 = vunpack.c.h.b16 %v892
          %v962 = vunpack.c.l.b16 %v893
          %v963 = vunpack.c.h.b16 %v893
          %v964 = vunpack.c.l.b16 %v894
          %v965 = vunpack.c.h.b16 %v894
          %v966 = vunpack.c.l.b16 %v895
          %v967 = vunpack.c.h.b16 %v895
          %v968 = vunpack.c.l.b16 %v896
          %v969 = vunpack.c.h.b16 %v896
          %v970 = vunpack.c.l.b16 %v897
          %v971 = vunpack.c.h.b16 %v897
          %v972 = vunpack.c.l.b16 %v898
          %v973 = vunpack.c.h.b16 %v898
          %v974 = vunpack.c.l.b16 %v899
          %v975 = vunpack.c.h.b16 %v899
          %v976 = vunpack.c.l.b16 %v900
          %v977 = vunpack.c.h.b16 %v900
          %v978 = vunpack.c.l.b16 %v901
          %v979 = vunpack.c.h.b16 %v901
          %v980 = vunpack.c.l.b16 %v902
          %v981 = vunpack.c.h.b16 %v902
          %v982 = vunpack.c.l.b16 %v903
          %v983 = vunpack.c.h.b16 %v903
          %v984 = vunpack.c.l.b16 %v904
          %v985 = vunpack.c.h.b16 %v904
          %v986 = vunpack.c.l.b16 %v905
          %v987 = vunpack.c.h.b16 %v905
          %v988 = vunpack.c.l.b16 %v906
          %v989 = vunpack.c.h.b16 %v906
          %v990 = vunpack.c.l.b16 %v907
          %v991 = vunpack.c.h.b16 %v907
          %v992 = vunpack.c.l.b16 %v908
          %v993 = vunpack.c.h.b16 %v908
          %v994 = vunpack.c.l.b16 %v909
          %v995 = vunpack.c.h.b16 %v909
          %v996 = vunpack.c.l.b16 %v910
          %v997 = vunpack.c.h.b16 %v910
          %v998 = vunpack.c.l.b16 %v911
          %v999 = vunpack.c.h.b16 %v911
          %v1000 = vunpack.c.l.b16 %v912
          %v1001 = vunpack.c.h.b16 %v912
          %v1002 = vunpack.c.l.b16 %v913
          %v1003 = vunpack.c.h.b16 %v913
          %v1004 = vunpack.c.l.b16 %v914
          %v1005 = vunpack.c.h.b16 %v914
          %v1006 = vunpack.c.l.b16 %v915
          %v1007 = vunpack.c.h.b16 %v915
          %v1008 = vunpack.c.l.b16 %v916
          %v1009 = vunpack.c.h.b16 %v916
          %v1010 = vunpack.c.l.b16 %v917
          %v1011 = vunpack.c.h.b16 %v917
          %v1012 = vunpack.c.l.b16 %v918
          %v1013 = vunpack.c.h.b16 %v918
          %v1014 = vunpack.c.l.b16 %v919
          %v1015 = vunpack.c.h.b16 %v919
          %v1016 = vpack.c.b16 %v954, %v952
          %v1017 = vpack.c.b16 %v955, %v953
          %v1018 = vpack.c.b16 %v958, %v956
          %v1019 = vpack.c.b16 %v959, %v957
          %v1020 = vpack.c.b16 %v962, %v960
          %v1021 = vpack.c.b16 %v963, %v961
          %v1022 = vpack.c.b16 %v966, %v964
          %v1023 = vpack.c.b16 %v967, %v965
          %v1024 = vpack.c.b16 %v970, %v968
          %v1025 = vpack.c.b16 %v971, %v969
          %v1026 = vpack.c.b16 %v974, %v972
          %v1027 = vpack.c.b16 %v975, %v973
          %v1028 = vpack.c.b16 %v978, %v976
          %v1029 = vpack.c.b16 %v979, %v977
          %v1030 = vpack.c.b16 %v982, %v980
          %v1031 = vpack.c.b16 %v983, %v981
          %v1032 = vpack.c.b16 %v986, %v984
          %v1033 = vpack.c.b16 %v987, %v985
          %v1034 = vpack.c.b16 %v990, %v988
          %v1035 = vpack.c.b16 %v991, %v989
          %v1036 = vpack.c.b16 %v994, %v992
          %v1037 = vpack.c.b16 %v995, %v993
          %v1038 = vpack.c.b16 %v998, %v996
          %v1039 = vpack.c.b16 %v999, %v997
          %v1040 = vpack.c.b16 %v1002, %v1000
          %v1041 = vpack.c.b16 %v1003, %v1001
          %v1042 = vpack.c.b16 %v1006, %v1004
          %v1043 = vpack.c.b16 %v1007, %v1005
          %v1044 = vpack.c.b16 %v1010, %v1008
          %v1045 = vpack.c.b16 %v1011, %v1009
          %v1046 = vpack.c.b16 %v1014, %v1012
          %v1047 = vpack.c.b16 %v1015, %v1013
          %1080 = vmatpush.bf16.msra.mxu0 %v1030
          %1081 = vmatpush.bf16.msra.mxu0 %v1028
          %1082 = vmatpush.bf16.msra.mxu0 %v1026
          %1083 = vmatpush.bf16.msra.mxu0 %v1024
          %1084 = vmatpush.bf16.msra.mxu0 %v1022
          %1085 = vmatpush.bf16.msra.mxu0 %v1020
          %1086 = vmatpush.bf16.msra.mxu0 %v1018
          %1087 = vmatpush.bf16.msra.mxu0 %v1016
          %1088 = vmatmul.bf16.gmra.mxu0 %v872
          %v1089 = vpop.f32.mrf.mxu0
          %v1090 = vadd.f32 0.0, %v1089
          %v1091 = vpop.f32.mrf.mxu0
          %v1092 = vadd.f32 0.0, %v1091
          %1093 = vmatmul.bf16.gmra.mxu0 %v874
          %v1094 = vpop.f32.mrf.mxu0
          %v1095 = vadd.f32 0.0, %v1094
          %v1096 = vpop.f32.mrf.mxu0
          %v1097 = vadd.f32 0.0, %v1096
          %1098 = vmatmul.bf16.gmra.mxu0 %v876
          %v1099 = vpop.f32.mrf.mxu0
          %v1100 = vadd.f32 0.0, %v1099
          %v1101 = vpop.f32.mrf.mxu0
          %v1102 = vadd.f32 0.0, %v1101
          %1103 = vmatmul.bf16.gmra.mxu0 %v878
          %v1104 = vpop.f32.mrf.mxu0
          %v1105 = vadd.f32 0.0, %v1104
          %v1106 = vpop.f32.mrf.mxu0
          %v1107 = vadd.f32 0.0, %v1106
          %1108 = vmatmul.bf16.gmra.mxu0 %v880
          %v1109 = vpop.f32.mrf.mxu0
          %v1110 = vadd.f32 0.0, %v1109
          %v1111 = vpop.f32.mrf.mxu0
          %v1112 = vadd.f32 0.0, %v1111
          %1113 = vmatmul.bf16.gmra.mxu0 %v882
          %v1114 = vpop.f32.mrf.mxu0
          %v1115 = vadd.f32 0.0, %v1114
          %v1116 = vpop.f32.mrf.mxu0
          %v1117 = vadd.f32 0.0, %v1116
          %1118 = vmatmul.bf16.gmra.mxu0 %v884
          %v1119 = vpop.f32.mrf.mxu0
          %v1120 = vadd.f32 0.0, %v1119
          %v1121 = vpop.f32.mrf.mxu0
          %v1122 = vadd.f32 0.0, %v1121
          %1123 = vmatmul.bf16.gmra.mxu0 %v886
          %v1124 = vpop.f32.mrf.mxu0
          %v1125 = vadd.f32 0.0, %v1124
          %v1126 = vpop.f32.mrf.mxu0
          %v1127 = vadd.f32 0.0, %v1126
          %1128 = vdwg.mxu0
          %1129 = vmatpush.bf16.msra.mxu0 %v1046
          %1130 = vmatpush.bf16.msra.mxu0 %v1044
          %1131 = vmatpush.bf16.msra.mxu0 %v1042
          %1132 = vmatpush.bf16.msra.mxu0 %v1040
          %1133 = vmatpush.bf16.msra.mxu0 %v1038
          %1134 = vmatpush.bf16.msra.mxu0 %v1036
          %1135 = vmatpush.bf16.msra.mxu0 %v1034
          %1136 = vmatpush.bf16.msra.mxu0 %v1032
          %1137 = vmatmul.bf16.gmra.mxu0 %v873
          %v1138 = vpop.f32.mrf.mxu0
          %v1139 = vadd.f32 %v1090, %v1138
          %v1140 = vpop.f32.mrf.mxu0
          %v1141 = vadd.f32 %v1092, %v1140
          %1142 = vmatmul.bf16.gmra.mxu0 %v875
          %v1143 = vpop.f32.mrf.mxu0
          %v1144 = vadd.f32 %v1095, %v1143
          %v1145 = vpop.f32.mrf.mxu0
          %v1146 = vadd.f32 %v1097, %v1145
          %1147 = vmatmul.bf16.gmra.mxu0 %v877
          %v1148 = vpop.f32.mrf.mxu0
          %v1149 = vadd.f32 %v1100, %v1148
          %v1150 = vpop.f32.mrf.mxu0
          %v1151 = vadd.f32 %v1102, %v1150
          %1152 = vmatmul.bf16.gmra.mxu0 %v879
          %v1153 = vpop.f32.mrf.mxu0
          %v1154 = vadd.f32 %v1105, %v1153
          %v1155 = vpop.f32.mrf.mxu0
          %v1156 = vadd.f32 %v1107, %v1155
          %1157 = vmatmul.bf16.gmra.mxu0 %v881
          %v1158 = vpop.f32.mrf.mxu0
          %v1159 = vadd.f32 %v1110, %v1158
          %v1160 = vpop.f32.mrf.mxu0
          %v1161 = vadd.f32 %v1112, %v1160
          %1162 = vmatmul.bf16.gmra.mxu0 %v883
          %v1163 = vpop.f32.mrf.mxu0
          %v1164 = vadd.f32 %v1115, %v1163
          %v1165 = vpop.f32.mrf.mxu0
          %v1166 = vadd.f32 %v1117, %v1165
          %1167 = vmatmul.bf16.gmra.mxu0 %v885
          %v1168 = vpop.f32.mrf.mxu0
          %v1169 = vadd.f32 %v1120, %v1168
          %v1170 = vpop.f32.mrf.mxu0
          %v1171 = vadd.f32 %v1122, %v1170
          %1172 = vmatmul.bf16.gmra.mxu0 %v887
          %v1173 = vpop.f32.mrf.mxu0
          %v1174 = vadd.f32 %v1125, %v1173
          %v1175 = vpop.f32.mrf.mxu0
          %v1176 = vadd.f32 %v1127, %v1175
          %1177 = vdwg.mxu0
          %1178 = vmatpush.bf16.msra.mxu0 %v1031
          %1179 = vmatpush.bf16.msra.mxu0 %v1029
          %1180 = vmatpush.bf16.msra.mxu0 %v1027
          %1181 = vmatpush.bf16.msra.mxu0 %v1025
          %1182 = vmatpush.bf16.msra.mxu0 %v1023
          %1183 = vmatpush.bf16.msra.mxu0 %v1021
          %1184 = vmatpush.bf16.msra.mxu0 %v1019
          %1185 = vmatpush.bf16.msra.mxu0 %v1017
          %1186 = vmatmul.bf16.gmra.mxu0 %v872
          %v1187 = vpop.f32.mrf.mxu0
          %v1188 = vadd.f32 0.0, %v1187
          %v1189 = vpop.f32.mrf.mxu0
          %v1190 = vadd.f32 0.0, %v1189
          %1191 = vmatmul.bf16.gmra.mxu0 %v874
          %v1192 = vpop.f32.mrf.mxu0
          %v1193 = vadd.f32 0.0, %v1192
          %v1194 = vpop.f32.mrf.mxu0
          %v1195 = vadd.f32 0.0, %v1194
          %1196 = vmatmul.bf16.gmra.mxu0 %v876
          %v1197 = vpop.f32.mrf.mxu0
          %v1198 = vadd.f32 0.0, %v1197
          %v1199 = vpop.f32.mrf.mxu0
          %v1200 = vadd.f32 0.0, %v1199
          %1201 = vmatmul.bf16.gmra.mxu0 %v878
          %v1202 = vpop.f32.mrf.mxu0
          %v1203 = vadd.f32 0.0, %v1202
          %v1204 = vpop.f32.mrf.mxu0
          %v1205 = vadd.f32 0.0, %v1204
          %1206 = vmatmul.bf16.gmra.mxu0 %v880
          %v1207 = vpop.f32.mrf.mxu0
          %v1208 = vadd.f32 0.0, %v1207
          %v1209 = vpop.f32.mrf.mxu0
          %v1210 = vadd.f32 0.0, %v1209
          %1211 = vmatmul.bf16.gmra.mxu0 %v882
          %v1212 = vpop.f32.mrf.mxu0
          %v1213 = vadd.f32 0.0, %v1212
          %v1214 = vpop.f32.mrf.mxu0
          %v1215 = vadd.f32 0.0, %v1214
          %1216 = vmatmul.bf16.gmra.mxu0 %v884
          %v1217 = vpop.f32.mrf.mxu0
          %v1218 = vadd.f32 0.0, %v1217
          %v1219 = vpop.f32.mrf.mxu0
          %v1220 = vadd.f32 0.0, %v1219
          %1221 = vmatmul.bf16.gmra.mxu0 %v886
          %v1222 = vpop.f32.mrf.mxu0
          %v1223 = vadd.f32 0.0, %v1222
          %v1224 = vpop.f32.mrf.mxu0
          %v1225 = vadd.f32 0.0, %v1224
          %1226 = vdwg.mxu0
          %1227 = vmatpush.bf16.msra.mxu0 %v1047
          %1228 = vmatpush.bf16.msra.mxu0 %v1045
          %1229 = vmatpush.bf16.msra.mxu0 %v1043
          %1230 = vmatpush.bf16.msra.mxu0 %v1041
          %1231 = vmatpush.bf16.msra.mxu0 %v1039
          %1232 = vmatpush.bf16.msra.mxu0 %v1037
          %1233 = vmatpush.bf16.msra.mxu0 %v1035
          %1234 = vmatpush.bf16.msra.mxu0 %v1033
          %1235 = vmatmul.bf16.gmra.mxu0 %v873
          %v1236 = vpop.f32.mrf.mxu0
          %v1237 = vadd.f32 %v1188, %v1236
          %v1238 = vpop.f32.mrf.mxu0
          %v1239 = vadd.f32 %v1190, %v1238
          %1240 = vmatmul.bf16.gmra.mxu0 %v875
          %v1241 = vpop.f32.mrf.mxu0
          %v1242 = vadd.f32 %v1193, %v1241
          %v1243 = vpop.f32.mrf.mxu0
          %v1244 = vadd.f32 %v1195, %v1243
          %1245 = vmatmul.bf16.gmra.mxu0 %v877
          %v1246 = vpop.f32.mrf.mxu0
          %v1247 = vadd.f32 %v1198, %v1246
          %v1248 = vpop.f32.mrf.mxu0
          %v1249 = vadd.f32 %v1200, %v1248
          %1250 = vmatmul.bf16.gmra.mxu0 %v879
          %v1251 = vpop.f32.mrf.mxu0
          %v1252 = vadd.f32 %v1203, %v1251
          %v1253 = vpop.f32.mrf.mxu0
          %v1254 = vadd.f32 %v1205, %v1253
          %1255 = vmatmul.bf16.gmra.mxu0 %v881
          %v1256 = vpop.f32.mrf.mxu0
          %v1257 = vadd.f32 %v1208, %v1256
          %v1258 = vpop.f32.mrf.mxu0
          %v1259 = vadd.f32 %v1210, %v1258
          %1260 = vmatmul.bf16.gmra.mxu0 %v883
          %v1261 = vpop.f32.mrf.mxu0
          %v1262 = vadd.f32 %v1213, %v1261
          %v1263 = vpop.f32.mrf.mxu0
          %v1264 = vadd.f32 %v1215, %v1263
          %1265 = vmatmul.bf16.gmra.mxu0 %v885
          %v1266 = vpop.f32.mrf.mxu0
          %v1267 = vadd.f32 %v1218, %v1266
          %v1268 = vpop.f32.mrf.mxu0
          %v1269 = vadd.f32 %v1220, %v1268
          %1270 = vmatmul.bf16.gmra.mxu0 %v887
          %v1271 = vpop.f32.mrf.mxu0
          %v1272 = vadd.f32 %v1223, %v1271
          %v1273 = vpop.f32.mrf.mxu0
          %v1274 = vadd.f32 %v1225, %v1273
          %1275 = vdwg.mxu0
          %v1276 = vld [vmem:[#allocation3] ss:$2 sm:$0x3]
          %v1277 = vadd.f32 %v1139, %v1141
          %v1278 = vadd.f32 %v1277, %v1144
          %v1279 = vadd.f32 %v1278, %v1146
          %v1280 = vadd.f32 %v1279, %v1149
          %v1281 = vadd.f32 %v1280, %v1151
          %v1282 = vadd.f32 %v1281, %v1154
          %v1283 = vadd.f32 %v1282, %v1156
          %v1284 = vadd.f32 %v1283, %v1159
          %v1285 = vadd.f32 %v1284, %v1161
          %v1286 = vadd.f32 %v1285, %v1164
          %v1287 = vadd.f32 %v1286, %v1166
          %v1288 = vadd.f32 %v1287, %v1169
          %v1289 = vadd.f32 %v1288, %v1171
          %v1290 = vadd.f32 %v1289, %v1174
          %v1291 = vadd.f32 %v1290, %v1176
          %v1292 = vrot.slane %v1291, 4
          %v1293 = vadd.f32 %v1291, %v1292
          %v1294 = vrot.slane %v1293, 2
          %v1295 = vadd.f32 %v1293, %v1294
          %v1296 = vrot.slane %v1295, 1
          %v1297 = vadd.f32 %v1295, %v1296
          %v1298 = vadd.f32 %v1237, %v1239
          %v1299 = vadd.f32 %v1298, %v1242
          %v1300 = vadd.f32 %v1299, %v1244
          %v1301 = vadd.f32 %v1300, %v1247
          %v1302 = vadd.f32 %v1301, %v1249
          %v1303 = vadd.f32 %v1302, %v1252
          %v1304 = vadd.f32 %v1303, %v1254
          %v1305 = vadd.f32 %v1304, %v1257
          %v1306 = vadd.f32 %v1305, %v1259
          %v1307 = vadd.f32 %v1306, %v1262
          %v1308 = vadd.f32 %v1307, %v1264
          %v1309 = vadd.f32 %v1308, %v1267
          %v1310 = vadd.f32 %v1309, %v1269
          %v1311 = vadd.f32 %v1310, %v1272
          %v1312 = vadd.f32 %v1311, %v1274
          %v1313 = vrot.slane %v1312, 4
          %v1314 = vadd.f32 %v1312, %v1313
          %v1315 = vrot.slane %v1314, 2
          %v1316 = vadd.f32 %v1314, %v1315
          %v1317 = vrot.slane %v1316, 1
          %v1318 = vadd.f32 %v1316, %v1317
          %v1321 = vrot.slane %v1318, 7
          %vm1322 = vcmask 1040384
          %v1323 = vsel %vm1322, %v1297, %v1321
          %v1325 = vadd.f32 %v1276, %v1323
          %v1326 = vlaneseq
          %vm1327 = vcmp.ge.s32.totalorder %v1326, 0
          %vm1328 = vcmp.lt.s32.totalorder %v1326, 256
          %vm1329 = vmand %vm1327, %vm1328
          %1330 = vst.msk [vmem:[#allocation3] ss:$2 sm:$0x3] %vm1329, %v1325
          %s1331 = scalar_lea.vmem [#allocation3], 1
          %v1332 = vld [vmem:[%s1331] ss:$2 sm:$0x3]
          %v1333 = vmul.f32 %v1139, %v1139
          %v1334 = vmul.f32 %v1237, %v1237
          %v1335 = vmul.f32 %v1141, %v1141
          %v1336 = vmul.f32 %v1239, %v1239
          %v1337 = vmul.f32 %v1144, %v1144
          %v1338 = vmul.f32 %v1242, %v1242
          %v1339 = vmul.f32 %v1146, %v1146
          %v1340 = vmul.f32 %v1244, %v1244
          %v1341 = vmul.f32 %v1149, %v1149
          %v1342 = vmul.f32 %v1247, %v1247
          %v1343 = vmul.f32 %v1151, %v1151
          %v1344 = vmul.f32 %v1249, %v1249
          %v1345 = vmul.f32 %v1154, %v1154
          %v1346 = vmul.f32 %v1252, %v1252
          %v1347 = vmul.f32 %v1156, %v1156
          %v1348 = vmul.f32 %v1254, %v1254
          %v1349 = vmul.f32 %v1159, %v1159
          %v1350 = vmul.f32 %v1257, %v1257
          %v1351 = vmul.f32 %v1161, %v1161
          %v1352 = vmul.f32 %v1259, %v1259
          %v1353 = vmul.f32 %v1164, %v1164
          %v1354 = vmul.f32 %v1262, %v1262
          %v1355 = vmul.f32 %v1166, %v1166
          %v1356 = vmul.f32 %v1264, %v1264
          %v1357 = vmul.f32 %v1169, %v1169
          %v1358 = vmul.f32 %v1267, %v1267
          %v1359 = vmul.f32 %v1171, %v1171
          %v1360 = vmul.f32 %v1269, %v1269
          %v1361 = vmul.f32 %v1174, %v1174
          %v1362 = vmul.f32 %v1272, %v1272
          %v1363 = vmul.f32 %v1176, %v1176
          %v1364 = vmul.f32 %v1274, %v1274
          %v1365 = vadd.f32 %v1333, %v1335
          %v1366 = vadd.f32 %v1365, %v1337
          %v1367 = vadd.f32 %v1366, %v1339
          %v1368 = vadd.f32 %v1367, %v1341
          %v1369 = vadd.f32 %v1368, %v1343
          %v1370 = vadd.f32 %v1369, %v1345
          %v1371 = vadd.f32 %v1370, %v1347
          %v1372 = vadd.f32 %v1371, %v1349
          %v1373 = vadd.f32 %v1372, %v1351
          %v1374 = vadd.f32 %v1373, %v1353
          %v1375 = vadd.f32 %v1374, %v1355
          %v1376 = vadd.f32 %v1375, %v1357
          %v1377 = vadd.f32 %v1376, %v1359
          %v1378 = vadd.f32 %v1377, %v1361
          %v1379 = vadd.f32 %v1378, %v1363
          %v1380 = vrot.slane %v1379, 4
          %v1381 = vadd.f32 %v1379, %v1380
          %v1382 = vrot.slane %v1381, 2
          %v1383 = vadd.f32 %v1381, %v1382
          %v1384 = vrot.slane %v1383, 1
          %v1385 = vadd.f32 %v1383, %v1384
          %v1386 = vadd.f32 %v1334, %v1336
          %v1387 = vadd.f32 %v1386, %v1338
          %v1388 = vadd.f32 %v1387, %v1340
          %v1389 = vadd.f32 %v1388, %v1342
          %v1390 = vadd.f32 %v1389, %v1344
          %v1391 = vadd.f32 %v1390, %v1346
          %v1392 = vadd.f32 %v1391, %v1348
          %v1393 = vadd.f32 %v1392, %v1350
          %v1394 = vadd.f32 %v1393, %v1352
          %v1395 = vadd.f32 %v1394, %v1354
          %v1396 = vadd.f32 %v1395, %v1356
          %v1397 = vadd.f32 %v1396, %v1358
          %v1398 = vadd.f32 %v1397, %v1360
          %v1399 = vadd.f32 %v1398, %v1362
          %v1400 = vadd.f32 %v1399, %v1364
          %v1401 = vrot.slane %v1400, 4
          %v1402 = vadd.f32 %v1400, %v1401
          %v1403 = vrot.slane %v1402, 2
          %v1404 = vadd.f32 %v1402, %v1403
          %v1405 = vrot.slane %v1404, 1
          %v1406 = vadd.f32 %v1404, %v1405
          %v1409 = vrot.slane %v1406, 7
          %v1410 = vsel %vm1322, %v1385, %v1409
          %v1412 = vadd.f32 %v1332, %v1410
          %1413 = vst.msk [vmem:[%s1331] ss:$2 sm:$0x3] %vm1329, %v1412
        $region72: #{tpu_custom_call.1} parent=35 // pred_fallthru
          _
        // Predicated region
        $region73: #{tpu_custom_call.1} parent=35 // pred_check
          %p1414 = pneg %p324
        $region74: #{tpu_custom_call.1} parent=35 // pred_check_branch
          %1416 = sbr.rel (%p1414) target = $region76
        $region75: #{tpu_custom_call.1} parent=35 // pred_region
          %v1417 = vld [vmem:[#allocation4] ss:$2 sm:$0x3]
          %v1419 = vperm.slane %v1417, 0
          %v1420 = vperm.slane %v1417, 1
          %v1423 = vmul.f32 %v531, %v1419
          %v1424 = vmul.f32 %v580, %v1420
          %v1425 = vmul.f32 %v533, %v1419
          %v1426 = vmul.f32 %v582, %v1420
          %v1427 = vmul.f32 %v536, %v1419
          %v1428 = vmul.f32 %v585, %v1420
          %v1429 = vmul.f32 %v538, %v1419
          %v1430 = vmul.f32 %v587, %v1420
          %v1431 = vmul.f32 %v541, %v1419
          %v1432 = vmul.f32 %v590, %v1420
          %v1433 = vmul.f32 %v543, %v1419
          %v1434 = vmul.f32 %v592, %v1420
          %v1435 = vmul.f32 %v546, %v1419
          %v1436 = vmul.f32 %v595, %v1420
          %v1437 = vmul.f32 %v548, %v1419
          %v1438 = vmul.f32 %v597, %v1420
          %v1439 = vmul.f32 %v551, %v1419
          %v1440 = vmul.f32 %v600, %v1420
          %v1441 = vmul.f32 %v553, %v1419
          %v1442 = vmul.f32 %v602, %v1420
          %v1443 = vmul.f32 %v556, %v1419
          %v1444 = vmul.f32 %v605, %v1420
          %v1445 = vmul.f32 %v558, %v1419
          %v1446 = vmul.f32 %v607, %v1420
          %v1447 = vmul.f32 %v561, %v1419
          %v1448 = vmul.f32 %v610, %v1420
          %v1449 = vmul.f32 %v563, %v1419
          %v1450 = vmul.f32 %v612, %v1420
          %v1451 = vmul.f32 %v566, %v1419
          %v1452 = vmul.f32 %v615, %v1420
          %v1453 = vmul.f32 %v568, %v1419
          %v1454 = vmul.f32 %v617, %v1420
          %s1455 = scalar_lea.vmem [#allocation4], 1
          %v1456 = vld [vmem:[%s1455] ss:$2 sm:$0x3]
          %v1458 = vperm.slane %v1456, 0
          %v1459 = vperm.slane %v1456, 1
          %v1462 = vadd.f32 %v1423, %v1458
          %v1463 = vadd.f32 %v1424, %v1459
          %v1464 = vadd.f32 %v1425, %v1458
          %v1465 = vadd.f32 %v1426, %v1459
          %v1466 = vadd.f32 %v1427, %v1458
          %v1467 = vadd.f32 %v1428, %v1459
          %v1468 = vadd.f32 %v1429, %v1458
          %v1469 = vadd.f32 %v1430, %v1459
          %v1470 = vadd.f32 %v1431, %v1458
          %v1471 = vadd.f32 %v1432, %v1459
          %v1472 = vadd.f32 %v1433, %v1458
          %v1473 = vadd.f32 %v1434, %v1459
          %v1474 = vadd.f32 %v1435, %v1458
          %v1475 = vadd.f32 %v1436, %v1459
          %v1476 = vadd.f32 %v1437, %v1458
          %v1477 = vadd.f32 %v1438, %v1459
          %v1478 = vadd.f32 %v1439, %v1458
          %v1479 = vadd.f32 %v1440, %v1459
          %v1480 = vadd.f32 %v1441, %v1458
          %v1481 = vadd.f32 %v1442, %v1459
          %v1482 = vadd.f32 %v1443, %v1458
          %v1483 = vadd.f32 %v1444, %v1459
          %v1484 = vadd.f32 %v1445, %v1458
          %v1485 = vadd.f32 %v1446, %v1459
          %v1486 = vadd.f32 %v1447, %v1458
          %v1487 = vadd.f32 %v1448, %v1459
          %v1488 = vadd.f32 %v1449, %v1458
          %v1489 = vadd.f32 %v1450, %v1459
          %v1490 = vadd.f32 %v1451, %v1458
          %v1491 = vadd.f32 %v1452, %v1459
          %v1492 = vadd.f32 %v1453, %v1458
          %v1493 = vadd.f32 %v1454, %v1459
          %v1494 = vmax.f32 %v1462, 0.0
          %v1495 = vmax.f32 %v1463, 0.0
          %v1496 = vmax.f32 %v1464, 0.0
          %v1497 = vmax.f32 %v1465, 0.0
          %v1498 = vmax.f32 %v1466, 0.0
          %v1499 = vmax.f32 %v1467, 0.0
          %v1500 = vmax.f32 %v1468, 0.0
          %v1501 = vmax.f32 %v1469, 0.0
          %v1502 = vmax.f32 %v1470, 0.0
          %v1503 = vmax.f32 %v1471, 0.0
          %v1504 = vmax.f32 %v1472, 0.0
          %v1505 = vmax.f32 %v1473, 0.0
          %v1506 = vmax.f32 %v1474, 0.0
          %v1507 = vmax.f32 %v1475, 0.0
          %v1508 = vmax.f32 %v1476, 0.0
          %v1509 = vmax.f32 %v1477, 0.0
          %v1510 = vmax.f32 %v1478, 0.0
          %v1511 = vmax.f32 %v1479, 0.0
          %v1512 = vmax.f32 %v1480, 0.0
          %v1513 = vmax.f32 %v1481, 0.0
          %v1514 = vmax.f32 %v1482, 0.0
          %v1515 = vmax.f32 %v1483, 0.0
          %v1516 = vmax.f32 %v1484, 0.0
          %v1517 = vmax.f32 %v1485, 0.0
          %v1518 = vmax.f32 %v1486, 0.0
          %v1519 = vmax.f32 %v1487, 0.0
          %v1520 = vmax.f32 %v1488, 0.0
          %v1521 = vmax.f32 %v1489, 0.0
          %v1522 = vmax.f32 %v1490, 0.0
          %v1523 = vmax.f32 %v1491, 0.0
          %v1524 = vmax.f32 %v1492, 0.0
          %v1525 = vmax.f32 %v1493, 0.0
          %v1526 = vpack.c.bf16 %v1496, %v1494
          %v1527 = vpack.c.bf16 %v1497, %v1495
          %v1528 = vpack.c.bf16 %v1500, %v1498
          %v1529 = vpack.c.bf16 %v1501, %v1499
          %v1530 = vpack.c.bf16 %v1504, %v1502
          %v1531 = vpack.c.bf16 %v1505, %v1503
          %v1532 = vpack.c.bf16 %v1508, %v1506
          %v1533 = vpack.c.bf16 %v1509, %v1507
          %v1534 = vpack.c.bf16 %v1512, %v1510
          %v1535 = vpack.c.bf16 %v1513, %v1511
          %v1536 = vpack.c.bf16 %v1516, %v1514
          %v1537 = vpack.c.bf16 %v1517, %v1515
          %v1538 = vpack.c.bf16 %v1520, %v1518
          %v1539 = vpack.c.bf16 %v1521, %v1519
          %v1540 = vpack.c.bf16 %v1524, %v1522
          %v1541 = vpack.c.bf16 %v1525, %v1523
          %v1542 = vld [vmem:[#allocation11] sm:$0xff]
          %v1543 = vld [vmem:[#allocation11 + $0x8] sm:$0xff]
          %v1544 = vld [vmem:[#allocation11 + $0x10] sm:$0xff]
          %v1545 = vld [vmem:[#allocation11 + $0x18] sm:$0xff]
          %v1546 = vld [vmem:[#allocation11 + $0x20] sm:$0xff]
          %v1547 = vld [vmem:[#allocation11 + $0x28] sm:$0xff]
          %v1548 = vld [vmem:[#allocation11 + $0x30] sm:$0xff]
          %v1549 = vld [vmem:[#allocation11 + $0x38] sm:$0xff]
          %v1550 = vld [vmem:[#allocation11 + $0x40] sm:$0xff]
          %v1551 = vld [vmem:[#allocation11 + $0x48] sm:$0xff]
          %v1552 = vld [vmem:[#allocation11 + $0x50] sm:$0xff]
          %v1553 = vld [vmem:[#allocation11 + $0x58] sm:$0xff]
          %v1554 = vld [vmem:[#allocation11 + $0x60] sm:$0xff]
          %v1555 = vld [vmem:[#allocation11 + $0x68] sm:$0xff]
          %v1556 = vld [vmem:[#allocation11 + $0x70] sm:$0xff]
          %v1557 = vld [vmem:[#allocation11 + $0x78] sm:$0xff]
          %v1558 = vld [vmem:[#allocation11 + $0x80] sm:$0xff]
          %v1559 = vld [vmem:[#allocation11 + $0x88] sm:$0xff]
          %v1560 = vld [vmem:[#allocation11 + $0x90] sm:$0xff]
          %v1561 = vld [vmem:[#allocation11 + $0x98] sm:$0xff]
          %v1562 = vld [vmem:[#allocation11 + $0xa0] sm:$0xff]
          %v1563 = vld [vmem:[#allocation11 + $0xa8] sm:$0xff]
          %v1564 = vld [vmem:[#allocation11 + $0xb0] sm:$0xff]
          %v1565 = vld [vmem:[#allocation11 + $0xb8] sm:$0xff]
          %v1566 = vld [vmem:[#allocation11 + $0xc0] sm:$0xff]
          %v1567 = vld [vmem:[#allocation11 + $0xc8] sm:$0xff]
          %v1568 = vld [vmem:[#allocation11 + $0xd0] sm:$0xff]
          %v1569 = vld [vmem:[#allocation11 + $0xd8] sm:$0xff]
          %v1570 = vld [vmem:[#allocation11 + $0xe0] sm:$0xff]
          %v1571 = vld [vmem:[#allocation11 + $0xe8] sm:$0xff]
          %v1572 = vld [vmem:[#allocation11 + $0xf0] sm:$0xff]
          %v1573 = vld [vmem:[#allocation11 + $0xf8] sm:$0xff]
          %v1606 = vunpack.c.l.b16 %v1542
          %v1607 = vunpack.c.h.b16 %v1542
          %v1608 = vunpack.c.l.b16 %v1543
          %v1609 = vunpack.c.h.b16 %v1543
          %v1610 = vunpack.c.l.b16 %v1544
          %v1611 = vunpack.c.h.b16 %v1544
          %v1612 = vunpack.c.l.b16 %v1545
          %v1613 = vunpack.c.h.b16 %v1545
          %v1614 = vunpack.c.l.b16 %v1546
          %v1615 = vunpack.c.h.b16 %v1546
          %v1616 = vunpack.c.l.b16 %v1547
          %v1617 = vunpack.c.h.b16 %v1547
          %v1618 = vunpack.c.l.b16 %v1548
          %v1619 = vunpack.c.h.b16 %v1548
          %v1620 = vunpack.c.l.b16 %v1549
          %v1621 = vunpack.c.h.b16 %v1549
          %v1622 = vunpack.c.l.b16 %v1550
          %v1623 = vunpack.c.h.b16 %v1550
          %v1624 = vunpack.c.l.b16 %v1551
          %v1625 = vunpack.c.h.b16 %v1551
          %v1626 = vunpack.c.l.b16 %v1552
          %v1627 = vunpack.c.h.b16 %v1552
          %v1628 = vunpack.c.l.b16 %v1553
          %v1629 = vunpack.c.h.b16 %v1553
          %v1630 = vunpack.c.l.b16 %v1554
          %v1631 = vunpack.c.h.b16 %v1554
          %v1632 = vunpack.c.l.b16 %v1555
          %v1633 = vunpack.c.h.b16 %v1555
          %v1634 = vunpack.c.l.b16 %v1556
          %v1635 = vunpack.c.h.b16 %v1556
          %v1636 = vunpack.c.l.b16 %v1557
          %v1637 = vunpack.c.h.b16 %v1557
          %v1638 = vunpack.c.l.b16 %v1558
          %v1639 = vunpack.c.h.b16 %v1558
          %v1640 = vunpack.c.l.b16 %v1559
          %v1641 = vunpack.c.h.b16 %v1559
          %v1642 = vunpack.c.l.b16 %v1560
          %v1643 = vunpack.c.h.b16 %v1560
          %v1644 = vunpack.c.l.b16 %v1561
          %v1645 = vunpack.c.h.b16 %v1561
          %v1646 = vunpack.c.l.b16 %v1562
          %v1647 = vunpack.c.h.b16 %v1562
          %v1648 = vunpack.c.l.b16 %v1563
          %v1649 = vunpack.c.h.b16 %v1563
          %v1650 = vunpack.c.l.b16 %v1564
          %v1651 = vunpack.c.h.b16 %v1564
          %v1652 = vunpack.c.l.b16 %v1565
          %v1653 = vunpack.c.h.b16 %v1565
          %v1654 = vunpack.c.l.b16 %v1566
          %v1655 = vunpack.c.h.b16 %v1566
          %v1656 = vunpack.c.l.b16 %v1567
          %v1657 = vunpack.c.h.b16 %v1567
          %v1658 = vunpack.c.l.b16 %v1568
          %v1659 = vunpack.c.h.b16 %v1568
          %v1660 = vunpack.c.l.b16 %v1569
          %v1661 = vunpack.c.h.b16 %v1569
          %v1662 = vunpack.c.l.b16 %v1570
          %v1663 = vunpack.c.h.b16 %v1570
          %v1664 = vunpack.c.l.b16 %v1571
          %v1665 = vunpack.c.h.b16 %v1571
          %v1666 = vunpack.c.l.b16 %v1572
          %v1667 = vunpack.c.h.b16 %v1572
          %v1668 = vunpack.c.l.b16 %v1573
          %v1669 = vunpack.c.h.b16 %v1573
          %v1670 = vpack.c.b16 %v1608, %v1606
          %v1671 = vpack.c.b16 %v1609, %v1607
          %v1672 = vpack.c.b16 %v1612, %v1610
          %v1673 = vpack.c.b16 %v1613, %v1611
          %v1674 = vpack.c.b16 %v1616, %v1614
          %v1675 = vpack.c.b16 %v1617, %v1615
          %v1676 = vpack.c.b16 %v1620, %v1618
          %v1677 = vpack.c.b16 %v1621, %v1619
          %v1678 = vpack.c.b16 %v1624, %v1622
          %v1679 = vpack.c.b16 %v1625, %v1623
          %v1680 = vpack.c.b16 %v1628, %v1626
          %v1681 = vpack.c.b16 %v1629, %v1627
          %v1682 = vpack.c.b16 %v1632, %v1630
          %v1683 = vpack.c.b16 %v1633, %v1631
          %v1684 = vpack.c.b16 %v1636, %v1634
          %v1685 = vpack.c.b16 %v1637, %v1635
          %v1686 = vpack.c.b16 %v1640, %v1638
          %v1687 = vpack.c.b16 %v1641, %v1639
          %v1688 = vpack.c.b16 %v1644, %v1642
          %v1689 = vpack.c.b16 %v1645, %v1643
          %v1690 = vpack.c.b16 %v1648, %v1646
          %v1691 = vpack.c.b16 %v1649, %v1647
          %v1692 = vpack.c.b16 %v1652, %v1650
          %v1693 = vpack.c.b16 %v1653, %v1651
          %v1694 = vpack.c.b16 %v1656, %v1654
          %v1695 = vpack.c.b16 %v1657, %v1655
          %v1696 = vpack.c.b16 %v1660, %v1658
          %v1697 = vpack.c.b16 %v1661, %v1659
          %v1698 = vpack.c.b16 %v1664, %v1662
          %v1699 = vpack.c.b16 %v1665, %v1663
          %v1700 = vpack.c.b16 %v1668, %v1666
          %v1701 = vpack.c.b16 %v1669, %v1667
          %1734 = vmatpush.bf16.msra.mxu0 %v1684
          %1735 = vmatpush.bf16.msra.mxu0 %v1682
          %1736 = vmatpush.bf16.msra.mxu0 %v1680
          %1737 = vmatpush.bf16.msra.mxu0 %v1678
          %1738 = vmatpush.bf16.msra.mxu0 %v1676
          %1739 = vmatpush.bf16.msra.mxu0 %v1674
          %1740 = vmatpush.bf16.msra.mxu0 %v1672
          %1741 = vmatpush.bf16.msra.mxu0 %v1670
          %1742 = vmatmul.bf16.gmra.mxu0 %v1526
          %v1743 = vpop.f32.mrf.mxu0
          %v1744 = vadd.f32 0.0, %v1743
          %v1745 = vpop.f32.mrf.mxu0
          %v1746 = vadd.f32 0.0, %v1745
          %1747 = vmatmul.bf16.gmra.mxu0 %v1528
          %v1748 = vpop.f32.mrf.mxu0
          %v1749 = vadd.f32 0.0, %v1748
          %v1750 = vpop.f32.mrf.mxu0
          %v1751 = vadd.f32 0.0, %v1750
          %1752 = vmatmul.bf16.gmra.mxu0 %v1530
          %v1753 = vpop.f32.mrf.mxu0
          %v1754 = vadd.f32 0.0, %v1753
          %v1755 = vpop.f32.mrf.mxu0
          %v1756 = vadd.f32 0.0, %v1755
          %1757 = vmatmul.bf16.gmra.mxu0 %v1532
          %v1758 = vpop.f32.mrf.mxu0
          %v1759 = vadd.f32 0.0, %v1758
          %v1760 = vpop.f32.mrf.mxu0
          %v1761 = vadd.f32 0.0, %v1760
          %1762 = vmatmul.bf16.gmra.mxu0 %v1534
          %v1763 = vpop.f32.mrf.mxu0
          %v1764 = vadd.f32 0.0, %v1763
          %v1765 = vpop.f32.mrf.mxu0
          %v1766 = vadd.f32 0.0, %v1765
          %1767 = vmatmul.bf16.gmra.mxu0 %v1536
          %v1768 = vpop.f32.mrf.mxu0
          %v1769 = vadd.f32 0.0, %v1768
          %v1770 = vpop.f32.mrf.mxu0
          %v1771 = vadd.f32 0.0, %v1770
          %1772 = vmatmul.bf16.gmra.mxu0 %v1538
          %v1773 = vpop.f32.mrf.mxu0
          %v1774 = vadd.f32 0.0, %v1773
          %v1775 = vpop.f32.mrf.mxu0
          %v1776 = vadd.f32 0.0, %v1775
          %1777 = vmatmul.bf16.gmra.mxu0 %v1540
          %v1778 = vpop.f32.mrf.mxu0
          %v1779 = vadd.f32 0.0, %v1778
          %v1780 = vpop.f32.mrf.mxu0
          %v1781 = vadd.f32 0.0, %v1780
          %1782 = vdwg.mxu0
          %1783 = vmatpush.bf16.msra.mxu0 %v1700
          %1784 = vmatpush.bf16.msra.mxu0 %v1698
          %1785 = vmatpush.bf16.msra.mxu0 %v1696
          %1786 = vmatpush.bf16.msra.mxu0 %v1694
          %1787 = vmatpush.bf16.msra.mxu0 %v1692
          %1788 = vmatpush.bf16.msra.mxu0 %v1690
          %1789 = vmatpush.bf16.msra.mxu0 %v1688
          %1790 = vmatpush.bf16.msra.mxu0 %v1686
          %1791 = vmatmul.bf16.gmra.mxu0 %v1527
          %v1792 = vpop.f32.mrf.mxu0
          %v1793 = vadd.f32 %v1744, %v1792
          %v1794 = vpop.f32.mrf.mxu0
          %v1795 = vadd.f32 %v1746, %v1794
          %1796 = vmatmul.bf16.gmra.mxu0 %v1529
          %v1797 = vpop.f32.mrf.mxu0
          %v1798 = vadd.f32 %v1749, %v1797
          %v1799 = vpop.f32.mrf.mxu0
          %v1800 = vadd.f32 %v1751, %v1799
          %1801 = vmatmul.bf16.gmra.mxu0 %v1531
          %v1802 = vpop.f32.mrf.mxu0
          %v1803 = vadd.f32 %v1754, %v1802
          %v1804 = vpop.f32.mrf.mxu0
          %v1805 = vadd.f32 %v1756, %v1804
          %1806 = vmatmul.bf16.gmra.mxu0 %v1533
          %v1807 = vpop.f32.mrf.mxu0
          %v1808 = vadd.f32 %v1759, %v1807
          %v1809 = vpop.f32.mrf.mxu0
          %v1810 = vadd.f32 %v1761, %v1809
          %1811 = vmatmul.bf16.gmra.mxu0 %v1535
          %v1812 = vpop.f32.mrf.mxu0
          %v1813 = vadd.f32 %v1764, %v1812
          %v1814 = vpop.f32.mrf.mxu0
          %v1815 = vadd.f32 %v1766, %v1814
          %1816 = vmatmul.bf16.gmra.mxu0 %v1537
          %v1817 = vpop.f32.mrf.mxu0
          %v1818 = vadd.f32 %v1769, %v1817
          %v1819 = vpop.f32.mrf.mxu0
          %v1820 = vadd.f32 %v1771, %v1819
          %1821 = vmatmul.bf16.gmra.mxu0 %v1539
          %v1822 = vpop.f32.mrf.mxu0
          %v1823 = vadd.f32 %v1774, %v1822
          %v1824 = vpop.f32.mrf.mxu0
          %v1825 = vadd.f32 %v1776, %v1824
          %1826 = vmatmul.bf16.gmra.mxu0 %v1541
          %v1827 = vpop.f32.mrf.mxu0
          %v1828 = vadd.f32 %v1779, %v1827
          %v1829 = vpop.f32.mrf.mxu0
          %v1830 = vadd.f32 %v1781, %v1829
          %1831 = vdwg.mxu0
          %1832 = vmatpush.bf16.msra.mxu0 %v1685
          %1833 = vmatpush.bf16.msra.mxu0 %v1683
          %1834 = vmatpush.bf16.msra.mxu0 %v1681
          %1835 = vmatpush.bf16.msra.mxu0 %v1679
          %1836 = vmatpush.bf16.msra.mxu0 %v1677
          %1837 = vmatpush.bf16.msra.mxu0 %v1675
          %1838 = vmatpush.bf16.msra.mxu0 %v1673
          %1839 = vmatpush.bf16.msra.mxu0 %v1671
          %1840 = vmatmul.bf16.gmra.mxu0 %v1526
          %v1841 = vpop.f32.mrf.mxu0
          %v1842 = vadd.f32 0.0, %v1841
          %v1843 = vpop.f32.mrf.mxu0
          %v1844 = vadd.f32 0.0, %v1843
          %1845 = vmatmul.bf16.gmra.mxu0 %v1528
          %v1846 = vpop.f32.mrf.mxu0
          %v1847 = vadd.f32 0.0, %v1846
          %v1848 = vpop.f32.mrf.mxu0
          %v1849 = vadd.f32 0.0, %v1848
          %1850 = vmatmul.bf16.gmra.mxu0 %v1530
          %v1851 = vpop.f32.mrf.mxu0
          %v1852 = vadd.f32 0.0, %v1851
          %v1853 = vpop.f32.mrf.mxu0
          %v1854 = vadd.f32 0.0, %v1853
          %1855 = vmatmul.bf16.gmra.mxu0 %v1532
          %v1856 = vpop.f32.mrf.mxu0
          %v1857 = vadd.f32 0.0, %v1856
          %v1858 = vpop.f32.mrf.mxu0
          %v1859 = vadd.f32 0.0, %v1858
          %1860 = vmatmul.bf16.gmra.mxu0 %v1534
          %v1861 = vpop.f32.mrf.mxu0
          %v1862 = vadd.f32 0.0, %v1861
          %v1863 = vpop.f32.mrf.mxu0
          %v1864 = vadd.f32 0.0, %v1863
          %1865 = vmatmul.bf16.gmra.mxu0 %v1536
          %v1866 = vpop.f32.mrf.mxu0
          %v1867 = vadd.f32 0.0, %v1866
          %v1868 = vpop.f32.mrf.mxu0
          %v1869 = vadd.f32 0.0, %v1868
          %1870 = vmatmul.bf16.gmra.mxu0 %v1538
          %v1871 = vpop.f32.mrf.mxu0
          %v1872 = vadd.f32 0.0, %v1871
          %v1873 = vpop.f32.mrf.mxu0
          %v1874 = vadd.f32 0.0, %v1873
          %1875 = vmatmul.bf16.gmra.mxu0 %v1540
          %v1876 = vpop.f32.mrf.mxu0
          %v1877 = vadd.f32 0.0, %v1876
          %v1878 = vpop.f32.mrf.mxu0
          %v1879 = vadd.f32 0.0, %v1878
          %1880 = vdwg.mxu0
          %1881 = vmatpush.bf16.msra.mxu0 %v1701
          %1882 = vmatpush.bf16.msra.mxu0 %v1699
          %1883 = vmatpush.bf16.msra.mxu0 %v1697
          %1884 = vmatpush.bf16.msra.mxu0 %v1695
          %1885 = vmatpush.bf16.msra.mxu0 %v1693
          %1886 = vmatpush.bf16.msra.mxu0 %v1691
          %1887 = vmatpush.bf16.msra.mxu0 %v1689
          %1888 = vmatpush.bf16.msra.mxu0 %v1687
          %1889 = vmatmul.bf16.gmra.mxu0 %v1527
          %v1890 = vpop.f32.mrf.mxu0
          %v1891 = vadd.f32 %v1842, %v1890
          %v1892 = vpop.f32.mrf.mxu0
          %v1893 = vadd.f32 %v1844, %v1892
          %1894 = vmatmul.bf16.gmra.mxu0 %v1529
          %v1895 = vpop.f32.mrf.mxu0
          %v1896 = vadd.f32 %v1847, %v1895
          %v1897 = vpop.f32.mrf.mxu0
          %v1898 = vadd.f32 %v1849, %v1897
          %1899 = vmatmul.bf16.gmra.mxu0 %v1531
          %v1900 = vpop.f32.mrf.mxu0
          %v1901 = vadd.f32 %v1852, %v1900
          %v1902 = vpop.f32.mrf.mxu0
          %v1903 = vadd.f32 %v1854, %v1902
          %1904 = vmatmul.bf16.gmra.mxu0 %v1533
          %v1905 = vpop.f32.mrf.mxu0
          %v1906 = vadd.f32 %v1857, %v1905
          %v1907 = vpop.f32.mrf.mxu0
          %v1908 = vadd.f32 %v1859, %v1907
          %1909 = vmatmul.bf16.gmra.mxu0 %v1535
          %v1910 = vpop.f32.mrf.mxu0
          %v1911 = vadd.f32 %v1862, %v1910
          %v1912 = vpop.f32.mrf.mxu0
          %v1913 = vadd.f32 %v1864, %v1912
          %1914 = vmatmul.bf16.gmra.mxu0 %v1537
          %v1915 = vpop.f32.mrf.mxu0
          %v1916 = vadd.f32 %v1867, %v1915
          %v1917 = vpop.f32.mrf.mxu0
          %v1918 = vadd.f32 %v1869, %v1917
          %1919 = vmatmul.bf16.gmra.mxu0 %v1539
          %v1920 = vpop.f32.mrf.mxu0
          %v1921 = vadd.f32 %v1872, %v1920
          %v1922 = vpop.f32.mrf.mxu0
          %v1923 = vadd.f32 %v1874, %v1922
          %1924 = vmatmul.bf16.gmra.mxu0 %v1541
          %v1925 = vpop.f32.mrf.mxu0
          %v1926 = vadd.f32 %v1877, %v1925
          %v1927 = vpop.f32.mrf.mxu0
          %v1928 = vadd.f32 %v1879, %v1927
          %1929 = vdwg.mxu0
          %v1930 = vld [vmem:[#allocation5] ss:$2 sm:$0x3]
          %v1932 = vperm.slane %v1930, 0
          %v1933 = vperm.slane %v1930, 1
          %v1936 = vmul.f32 %v1793, %v1932
          %v1937 = vmul.f32 %v1891, %v1933
          %v1938 = vmul.f32 %v1795, %v1932
          %v1939 = vmul.f32 %v1893, %v1933
          %v1940 = vmul.f32 %v1798, %v1932
          %v1941 = vmul.f32 %v1896, %v1933
          %v1942 = vmul.f32 %v1800, %v1932
          %v1943 = vmul.f32 %v1898, %v1933
          %v1944 = vmul.f32 %v1803, %v1932
          %v1945 = vmul.f32 %v1901, %v1933
          %v1946 = vmul.f32 %v1805, %v1932
          %v1947 = vmul.f32 %v1903, %v1933
          %v1948 = vmul.f32 %v1808, %v1932
          %v1949 = vmul.f32 %v1906, %v1933
          %v1950 = vmul.f32 %v1810, %v1932
          %v1951 = vmul.f32 %v1908, %v1933
          %v1952 = vmul.f32 %v1813, %v1932
          %v1953 = vmul.f32 %v1911, %v1933
          %v1954 = vmul.f32 %v1815, %v1932
          %v1955 = vmul.f32 %v1913, %v1933
          %v1956 = vmul.f32 %v1818, %v1932
          %v1957 = vmul.f32 %v1916, %v1933
          %v1958 = vmul.f32 %v1820, %v1932
          %v1959 = vmul.f32 %v1918, %v1933
          %v1960 = vmul.f32 %v1823, %v1932
          %v1961 = vmul.f32 %v1921, %v1933
          %v1962 = vmul.f32 %v1825, %v1932
          %v1963 = vmul.f32 %v1923, %v1933
          %v1964 = vmul.f32 %v1828, %v1932
          %v1965 = vmul.f32 %v1926, %v1933
          %v1966 = vmul.f32 %v1830, %v1932
          %v1967 = vmul.f32 %v1928, %v1933
          %s1968 = scalar_lea.vmem [#allocation5], 1
          %v1969 = vld [vmem:[%s1968] ss:$2 sm:$0x3]
          %v1971 = vperm.slane %v1969, 0
          %v1972 = vperm.slane %v1969, 1
          %v1975 = vadd.f32 %v1936, %v1971
          %v1976 = vadd.f32 %v1937, %v1972
          %v1977 = vadd.f32 %v1938, %v1971
          %v1978 = vadd.f32 %v1939, %v1972
          %v1979 = vadd.f32 %v1940, %v1971
          %v1980 = vadd.f32 %v1941, %v1972
          %v1981 = vadd.f32 %v1942, %v1971
          %v1982 = vadd.f32 %v1943, %v1972
          %v1983 = vadd.f32 %v1944, %v1971
          %v1984 = vadd.f32 %v1945, %v1972
          %v1985 = vadd.f32 %v1946, %v1971
          %v1986 = vadd.f32 %v1947, %v1972
          %v1987 = vadd.f32 %v1948, %v1971
          %v1988 = vadd.f32 %v1949, %v1972
          %v1989 = vadd.f32 %v1950, %v1971
          %v1990 = vadd.f32 %v1951, %v1972
          %v1991 = vadd.f32 %v1952, %v1971
          %v1992 = vadd.f32 %v1953, %v1972
          %v1993 = vadd.f32 %v1954, %v1971
          %v1994 = vadd.f32 %v1955, %v1972
          %v1995 = vadd.f32 %v1956, %v1971
          %v1996 = vadd.f32 %v1957, %v1972
          %v1997 = vadd.f32 %v1958, %v1971
          %v1998 = vadd.f32 %v1959, %v1972
          %v1999 = vadd.f32 %v1960, %v1971
          %v2000 = vadd.f32 %v1961, %v1972
          %v2001 = vadd.f32 %v1962, %v1971
          %v2002 = vadd.f32 %v1963, %v1972
          %v2003 = vadd.f32 %v1964, %v1971
          %v2004 = vadd.f32 %v1965, %v1972
          %v2005 = vadd.f32 %v1966, %v1971
          %v2006 = vadd.f32 %v1967, %v1972
          %2007 = vst [vmem:[%s277] sm:$0xff] %v1975
          %2008 = vst [vmem:[%s277 + $0x8] sm:$0xff] %v1976
          %2009 = vst [vmem:[%s277 + $0x10] sm:$0xff] %v1977
          %2010 = vst [vmem:[%s277 + $0x18] sm:$0xff] %v1978
          %2011 = vst [vmem:[%s277 + $0x20] sm:$0xff] %v1979
          %2012 = vst [vmem:[%s277 + $0x28] sm:$0xff] %v1980
          %2013 = vst [vmem:[%s277 + $0x30] sm:$0xff] %v1981
          %2014 = vst [vmem:[%s277 + $0x38] sm:$0xff] %v1982
          %2015 = vst [vmem:[%s277 + $0x40] sm:$0xff] %v1983
          %2016 = vst [vmem:[%s277 + $0x48] sm:$0xff] %v1984
          %2017 = vst [vmem:[%s277 + $0x50] sm:$0xff] %v1985
          %2018 = vst [vmem:[%s277 + $0x58] sm:$0xff] %v1986
          %2019 = vst [vmem:[%s277 + $0x60] sm:$0xff] %v1987
          %2020 = vst [vmem:[%s277 + $0x68] sm:$0xff] %v1988
          %2021 = vst [vmem:[%s277 + $0x70] sm:$0xff] %v1989
          %2022 = vst [vmem:[%s277 + $0x78] sm:$0xff] %v1990
          %2023 = vst [vmem:[%s277 + $0x80] sm:$0xff] %v1991
          %2024 = vst [vmem:[%s277 + $0x88] sm:$0xff] %v1992
          %2025 = vst [vmem:[%s277 + $0x90] sm:$0xff] %v1993
          %2026 = vst [vmem:[%s277 + $0x98] sm:$0xff] %v1994
          %2027 = vst [vmem:[%s277 + $0xa0] sm:$0xff] %v1995
          %2028 = vst [vmem:[%s277 + $0xa8] sm:$0xff] %v1996
          %2029 = vst [vmem:[%s277 + $0xb0] sm:$0xff] %v1997
          %2030 = vst [vmem:[%s277 + $0xb8] sm:$0xff] %v1998
          %2031 = vst [vmem:[%s277 + $0xc0] sm:$0xff] %v1999
          %2032 = vst [vmem:[%s277 + $0xc8] sm:$0xff] %v2000
          %2033 = vst [vmem:[%s277 + $0xd0] sm:$0xff] %v2001
          %2034 = vst [vmem:[%s277 + $0xd8] sm:$0xff] %v2002
          %2035 = vst [vmem:[%s277 + $0xe0] sm:$0xff] %v2003
          %2036 = vst [vmem:[%s277 + $0xe8] sm:$0xff] %v2004
          %2037 = vst [vmem:[%s277 + $0xf0] sm:$0xff] %v2005
          %2038 = vst [vmem:[%s277 + $0xf8] sm:$0xff] %v2006
        $region76: #{tpu_custom_call.1} parent=35 // pred_fallthru
          _
        %s2039 = sand.u32 %s132, 1
        %s2040 = scalar_lea.sflag [#allocation8], %s2039
        %s2041 = sand.u32 %s132, 1
        %s2042 = smul.addr %s2041, 256
        %s2043 = scalar_lea.vmem [#allocation14], %s2042
        // Predicated region
        $region77: #{tpu_custom_call.1} parent=35 // pred_check
          %p2044 = pneg %p142
        $region78: #{tpu_custom_call.1} parent=35 // pred_check_branch
          %2046 = sbr.rel (%p2044) target = $region80
        $region79: #{tpu_custom_call.1} parent=35 // pred_region
          %s2047 = smul.u32 16, %s28
          %2049 = vsyncadd %s2040, 0
          %s2050 = smul.addr %s2047, 2
          %s2051 = smul.addr %s2050, 8
          %s2052 = scalar_lea.hbm %s4, %s2051
          %s2053 = sshll.u32 %s2043, 4
          %s2054 = int_to_ptr.vmem [resolvable:$true] %s2053
          %s2055 = sshll.u32 %s2052, 4
          %s2056 = int_to_ptr.hbm [resolvable:$true] %s2055
          %2061 = dma.vmem_to_hbm [thread:$0]  %s2054, 4096, %s2056, %s2040, 256, 256, 16
        $region80: #{tpu_custom_call.1} parent=35 // pred_fallthru
          _
      $region36: #{tpu_custom_call.1} parent=5 // pred_fallthru
        _
      %p2062 = scmp.le.s32.totalorder 2, %s18
      // Predicated region
      $region81: #{tpu_custom_call.1} parent=5 // pred_check
        %p2063 = pneg %p2062
      $region82: #{tpu_custom_call.1} parent=5 // pred_check_branch
        %2065 = sbr.rel (%p2063) target = $region84
      $region83: #{tpu_custom_call.1} parent=5 // pred_region
        %s2066 = ssub.s32 %s18, 2
        // Predicated region
        $region85: #{tpu_custom_call.1} parent=83 // pred_check
          %p2067 = pneg %p148
        $region86: #{tpu_custom_call.1} parent=83 // pred_check_branch
          %2069 = sbr.rel (%p2067) target = $region88
        $region87: #{tpu_custom_call.1} parent=83 // pred_region
          %s2070 = sand.u32 %s133, 1
          %s2071 = scalar_lea.sflag [#allocation8], %s2070
          %s2072 = sand.u32 %s133, 1
          %s2073 = smul.addr %s2072, 256
          %s2074 = scalar_lea.vmem [#allocation14], %s2073
          %2076 = dma.done %s2071, 4096
        $region88: #{tpu_custom_call.1} parent=83 // pred_fallthru
          _
      $region84: #{tpu_custom_call.1} parent=5 // pred_fallthru
        _
    $region6: #{tpu_custom_call.1} parent=1 // loop_footer
      %s22 = sadd.s32 1, %s18
    $region7: #{tpu_custom_call.1} parent=1 // loop_footer_branch
      %17 = sbr.rel target = $region3
    $region8: #{tpu_custom_call.1} parent=1 // loop_exit
      _
    %2077 = vsyncpa [#allocation7], 1
    %s2078 = scalar_lea.sflag [#allocation7], 1
    %2079 = vsyncpa %s2078, 1
    %2080 = vsyncpa [#allocation10], 1
    %2081 = vsyncpa [#allocation13], 1
    %2082 = vsyncpa [#allocation8], 1
    %s2083 = scalar_lea.sflag [#allocation8], 1
    %2084 = vsyncpa %s2083, 1

</llo_original>
